<compile_context>
chip_gen: v7x
topology: tpu7x:2x2x1
jax: 0.10.0
libtpu: 0.0.40
codegen_flags: <defaults>
</compile_context>

<pallas_src>
import functools

import jax
import jax.numpy as jnp
from jax.experimental import pallas as pl
from jax.experimental.pallas import tpu as pltpu


def _mlp_kernel(x_ref, w1_ref, b1_ref, w2_ref, b2_ref, w3_ref, b3_ref, o_ref):
    # Layer 1: Linear (MXU, f32 accumulation) + bias + ReLU.
    x = x_ref[...].astype(w1_ref.dtype)        # in-kernel cast (free under MXU slack)
    h = jnp.dot(x, w1_ref[...], preferred_element_type=jnp.float32)
    h = jnp.maximum(h + b1_ref[...], 0.0)      # f32 epilogue (v5e has no bf16 VPU)

    # Hidden layer (mlp_depth=3 -> exactly one hidden Linear): Linear + ReLU.
    h = jnp.dot(h.astype(w2_ref.dtype), w2_ref[...],
                preferred_element_type=jnp.float32)
    h = jnp.maximum(h + b2_ref[...], 0.0)

    # Output layer: Linear (no activation), true-width store.
    out = jnp.dot(h.astype(w3_ref.dtype), w3_ref[...],
                  preferred_element_type=jnp.float32)
    o_ref[...] = (out + b3_ref[...]).astype(o_ref.dtype)


def prepare_params(w1, b1, w2, b2, w3, b3, *, param_dtype=jnp.bfloat16):
    """One-time parameter prep, hoisted out of the forward.

    Casts weights to the MXU operand dtype (bf16 default; pass jnp.float32 for
    exact parity with an all-f32 PyTorch DPLMLP) and reshapes biases
    defensively to (1, out_features). Weights must be (in_features,
    out_features), i.e. W_torch.T. Call once; reuse the result every forward.
    """
    def prep(w, b):
        w = jnp.asarray(w).astype(param_dtype)
        b = jnp.asarray(b).astype(jnp.float32).reshape(1, -1)
        return w, b

    w1, b1 = prep(w1, b1)
    w2, b2 = prep(w2, b2)
    w3, b3 = prep(w3, b3)
    return w1, b1, w2, b2, w3, b3


def _default_block_m(batch):
    # v5e/v6e (single TensorCore): fewest grid steps wins (~0.35us/step fixed).
    # v7x (2 TCs + "parallel" batch axis): want >=2 pipelined steps per core so
    # x-tile DMA / output writeback overlap with compute. Sweep {128, 256, 512}.
    if batch <= 256:
        return batch                        # one full-extent block (always legal)
    kind = ""
    try:
        kind = jax.devices()[0].device_kind.lower()
    except Exception:  # pragma: no cover - robust off-TPU
        pass
    if "v7" in kind or "7x" in kind:
        return 128                          # >=4 steps at batch>=512 -> 2+/core
    return min(batch, 512)                  # single-TC: as few steps as possible


def _resident_spec(shape):
    """Constant-index block (weights/biases resident across all batch tiles).

    Single-buffered: double-buffering a block that never changes wastes VMEM
    (2x w2 once mlp_width scales toward v7x's 64 MiB) and DMA bookkeeping.
    """
    try:
        return pl.BlockSpec(shape, lambda i: (0, 0), pipeline_mode=pl.Buffered(1))
    except TypeError:  # pragma: no cover - older JAX without pipeline_mode
        return pl.BlockSpec(shape, lambda i: (0, 0))


@functools.partial(jax.jit, static_argnames=("block_m",))
def dpl_mlp_forward(x, w1, b1, w2, b2, w3, b3, block_m=None):
    """Fused DPLMLP forward. x: (B, n_inputs) f32 -> (B, n_outputs) f32.

    Weights/biases should come from prepare_params() (cast/reshape done once,
    not per call).
    """
    B, n_in = x.shape
    width = w1.shape[1]
    n_out = w3.shape[1]

    if block_m is None:
        block_m = _default_block_m(B)
    block_m = min(block_m, B)
    grid = (pl.cdiv(B, block_m),)

    wbytes = w1.dtype.itemsize
    # VMEM footprint: double-buffered x/out tiles + single-buffered weights.
    vmem_bytes = (
        2 * block_m * n_in * 4
        + 2 * block_m * n_out * 4
        + (n_in * width + width * width + width * n_out) * wbytes
        + (2 * width + n_out) * 4
    )
    # Only raise the scoped-VMEM limit when the footprint actually needs it;
    # leave ~8 MiB headroom for compiler scratch.
    vmem_limit = None
    if vmem_bytes + (8 << 20) > (32 << 20):
        vmem_limit = vmem_bytes + (8 << 20)
    # NOTE(v7x, 64 MiB VMEM): once mlp_width >= ~2048, w2 alone is width^2 *
    # wbytes (8 MiB bf16 at 2048, 32 MiB at 4096). Weights are already
    # single-buffered; beyond that, tile the hidden dim instead of keeping full
    # weights resident: add a grid axis over w2/w3 column blocks with the layer-1
    # activation held in VMEM scratch and an f32 accumulator for layer 3 (or
    # pltpu.emit_pipeline over w2 column blocks).

    flops = 2 * B * (n_in * width + width * width + width * n_out)
    bytes_accessed = (
        B * n_in * 4
        + (n_in * width + width * width + width * n_out) * wbytes
        + (2 * width + n_out) * 4
        + B * n_out * 4
    )
    cost = pl.CostEstimate(flops=flops, transcendentals=0,
                           bytes_accessed=bytes_accessed)

    return pl.pallas_call(
        _mlp_kernel,
        out_shape=jax.ShapeDtypeStruct((B, n_out), jnp.float32),
        grid_spec=pltpu.PrefetchScalarGridSpec(
            num_scalar_prefetch=0,
            grid=grid,
            in_specs=[
                # x: tiled over batch rows; lane dim = full n_inputs extent.
                pl.BlockSpec((block_m, n_in), lambda i: (i, 0)),
                _resident_spec((n_in, width)),
                _resident_spec((1, width)),
                _resident_spec((width, width)),
                _resident_spec((1, width)),
                _resident_spec((width, n_out)),
                _resident_spec((1, n_out)),
            ],
            # True-width output block: a masked vst over n_out=8 lanes beats a
            # 128-wide padded slab (16x the bytes) + a separate slice copy.
            out_specs=pl.BlockSpec((block_m, n_out), lambda i: (i, 0)),
        ),
        compiler_params=pltpu.CompilerParams(
            dimension_semantics=("parallel",),   # megacore shards batch tiles
            vmem_limit_bytes=vmem_limit,
        ),
        cost_estimate=cost,
    )(x, w1, b1, w2, b2, w3, b3)


def init_params(key, n_inputs, n_outputs, mlp_width):
    """PyTorch nn.Linear-style init; weights as (in, out) so the kernel does x@W+b."""
    def linear(k, fan_in, fan_out):
        kw, kb = jax.random.split(k)
        bound = 1.0 / jnp.sqrt(fan_in)
        w = jax.random.uniform(kw, (fan_in, fan_out), jnp.float32, -bound, bound)
        b = jax.random.uniform(kb, (fan_out,), jnp.float32, -bound, bound)
        return w, b

    k1, k2, k3 = jax.random.split(key, 3)
    w1, b1 = linear(k1, n_inputs, mlp_width)
    w2, b2 = linear(k2, mlp_width, mlp_width)   # mlp_depth=3 -> one hidden Linear
    w3, b3 = linear(k3, mlp_width, n_outputs)
    return w1, b1, w2, b2, w3, b3


def reference_forward(x, w1, b1, w2, b2, w3, b3):
    """Pure-JAX reference mirroring the kernel's operand dtypes / f32 accum."""
    h = jnp.dot(x.astype(w1.dtype), w1, preferred_element_type=jnp.float32)
    h = jnp.maximum(h + b1, 0.0)
    h = jnp.dot(h.astype(w2.dtype), w2, preferred_element_type=jnp.float32)
    h = jnp.maximum(h + b2, 0.0)
    out = jnp.dot(h.astype(w3.dtype), w3, preferred_element_type=jnp.float32)
    return out + b3


if __name__ == "__main__":
    # Small shapes consistent with the module defaults (mlp_width=512, mlp_depth=3).
    batch, n_inputs, mlp_width, n_outputs = 64, 32, 512, 8

    key = jax.random.PRNGKey(0)
    kx, kx2, kp = jax.random.split(key, 3)
    x = jax.random.normal(kx, (batch, n_inputs), jnp.float32)

    raw = init_params(kp, n_inputs, n_outputs, mlp_width)
    params = prepare_params(*raw)            # one-time weight cast / bias reshape

    out = jax.block_until_ready(dpl_mlp_forward(x, *params))
    ref = reference_forward(x, *params)
    assert out.shape == (batch, n_outputs)
    assert bool(jnp.all(jnp.isfinite(out)))
    assert bool(jnp.allclose(out, ref, atol=2e-3, rtol=2e-3)), "mismatch vs reference"

    # Ragged batch: exercise the masked partial last block (B % block_m != 0).
    x2 = jax.random.normal(kx2, (37, n_inputs), jnp.float32)
    out2 = jax.block_until_ready(dpl_mlp_forward(x2, *params, block_m=16))
    ref2 = reference_forward(x2, *params)
    assert out2.shape == (37, n_outputs)
    assert bool(jnp.allclose(out2, ref2, atol=2e-3, rtol=2e-3)), "ragged-batch mismatch"

    print("KERNEL_OK")
</pallas_src>

<mosaic_0001>
module attributes {stable_mosaic.version = 11 : i64} {
  func.func @_mlp_kernel(%arg0: i32, %arg1: memref<64x32xf32, #tpu.memory_space<vmem>>, %arg2: memref<32x512xbf16, #tpu.memory_space<vmem>>, %arg3: memref<1x512xf32, #tpu.memory_space<vmem>>, %arg4: memref<512x512xbf16, #tpu.memory_space<vmem>>, %arg5: memref<1x512xf32, #tpu.memory_space<vmem>>, %arg6: memref<512x8xbf16, #tpu.memory_space<vmem>>, %arg7: memref<1x8xf32, #tpu.memory_space<vmem>>, %arg8: memref<64x8xf32, #tpu.memory_space<vmem>>) attributes {dimension_semantics = [#tpu.dimension_semantics<parallel>], iteration_bounds = array<i64: 1>, scalar_prefetch = 0 : i64, scratch_operands = 0 : i64, tpu.core_type = #tpu.core_type<tc>, window_params = [{transform_indices = @transform_0, window_bounds = array<i64: 64, 32>}, {pipeline_mode = #tpu.pipeline_mode<synchronous>, transform_indices = @transform_1, window_bounds = array<i64: 32, 512>}, {pipeline_mode = #tpu.pipeline_mode<synchronous>, transform_indices = @transform_2, window_bounds = array<i64: 1, 512>}, {pipeline_mode = #tpu.pipeline_mode<synchronous>, transform_indices = @transform_3, window_bounds = array<i64: 512, 512>}, {pipeline_mode = #tpu.pipeline_mode<synchronous>, transform_indices = @transform_4, window_bounds = array<i64: 1, 512>}, {pipeline_mode = #tpu.pipeline_mode<synchronous>, transform_indices = @transform_5, window_bounds = array<i64: 512, 8>}, {pipeline_mode = #tpu.pipeline_mode<synchronous>, transform_indices = @transform_6, window_bounds = array<i64: 1, 8>}, {transform_indices = @transform_7, window_bounds = array<i64: 64, 8>}]} {
    %c0 = arith.constant 0 : index
    %c0_0 = arith.constant 0 : index
    %0 = vector.load %arg1[%c0, %c0_0] : memref<64x32xf32, #tpu.memory_space<vmem>>, vector<64x32xf32>
    %1 = arith.truncf %0 : vector<64x32xf32> to vector<64x32xbf16>
    %c0_1 = arith.constant 0 : index
    %c0_2 = arith.constant 0 : index
    %2 = vector.load %arg2[%c0_1, %c0_2] : memref<32x512xbf16, #tpu.memory_space<vmem>>, vector<32x512xbf16>
    %cst = arith.constant dense<0.000000e+00> : vector<64x512xf32>
    %3 = tpu.matmul %1, %2, %cst {dimension_numbers = #tpu.dot_dimension_numbers<[1], [0], [0], [1], [0, 0, 1, 1], [], []>} : vector<64x32xbf16>, vector<32x512xbf16>, vector<64x512xf32> -> vector<64x512xf32>
    %c0_3 = arith.constant 0 : index
    %c0_4 = arith.constant 0 : index
    %4 = vector.load %arg3[%c0_3, %c0_4] : memref<1x512xf32, #tpu.memory_space<vmem>>, vector<1x512xf32>
    %5 = vector.broadcast %4 : vector<1x512xf32> to vector<64x512xf32>
    %6 = arith.addf %3, %5 : vector<64x512xf32>
    %cst_5 = arith.constant 0.000000e+00 : f32
    %7 = vector.broadcast %cst_5 : f32 to vector<64x512xf32>
    %8 = arith.maximumf %6, %7 : vector<64x512xf32>
    %9 = arith.truncf %8 : vector<64x512xf32> to vector<64x512xbf16>
    %c0_6 = arith.constant 0 : index
    %c0_7 = arith.constant 0 : index
    %10 = vector.load %arg4[%c0_6, %c0_7] : memref<512x512xbf16, #tpu.memory_space<vmem>>, vector<512x512xbf16>
    %cst_8 = arith.constant dense<0.000000e+00> : vector<64x512xf32>
    %11 = tpu.matmul %9, %10, %cst_8 {dimension_numbers = #tpu.dot_dimension_numbers<[1], [0], [0], [1], [0, 0, 1, 1], [], []>} : vector<64x512xbf16>, vector<512x512xbf16>, vector<64x512xf32> -> vector<64x512xf32>
    %c0_9 = arith.constant 0 : index
    %c0_10 = arith.constant 0 : index
    %12 = vector.load %arg5[%c0_9, %c0_10] : memref<1x512xf32, #tpu.memory_space<vmem>>, vector<1x512xf32>
    %13 = vector.broadcast %12 : vector<1x512xf32> to vector<64x512xf32>
    %14 = arith.addf %11, %13 : vector<64x512xf32>
    %cst_11 = arith.constant 0.000000e+00 : f32
    %15 = vector.broadcast %cst_11 : f32 to vector<64x512xf32>
    %16 = arith.maximumf %14, %15 : vector<64x512xf32>
    %17 = arith.truncf %16 : vector<64x512xf32> to vector<64x512xbf16>
    %c0_12 = arith.constant 0 : index
    %c0_13 = arith.constant 0 : index
    %18 = vector.load %arg6[%c0_12, %c0_13] : memref<512x8xbf16, #tpu.memory_space<vmem>>, vector<512x8xbf16>
    %cst_14 = arith.constant dense<0.000000e+00> : vector<64x8xf32>
    %19 = tpu.matmul %17, %18, %cst_14 {dimension_numbers = #tpu.dot_dimension_numbers<[1], [0], [0], [1], [0, 0, 1, 1], [], []>} : vector<64x512xbf16>, vector<512x8xbf16>, vector<64x8xf32> -> vector<64x8xf32>
    %c0_15 = arith.constant 0 : index
    %c0_16 = arith.constant 0 : index
    %20 = vector.load %arg7[%c0_15, %c0_16] : memref<1x8xf32, #tpu.memory_space<vmem>>, vector<1x8xf32>
    %21 = vector.broadcast %20 : vector<1x8xf32> to vector<64x8xf32>
    %22 = arith.addf %19, %21 : vector<64x8xf32>
    %c0_17 = arith.constant 0 : index
    %c0_18 = arith.constant 0 : index
    %23 = vector.load %arg8[%c0_17, %c0_18] : memref<64x8xf32, #tpu.memory_space<vmem>>, vector<64x8xf32>
    tpu.vector_store %arg8[%c0_17, %c0_18], %22 {strides = array<i32>} : memref<64x8xf32, #tpu.memory_space<vmem>>, vector<64x8xf32>,
    return
  }
  func.func @transform_0(%arg0: i32) -> (i32, i32) {
    %c0_i32 = arith.constant 0 : i32
    %c0_i32_0 = arith.constant 0 : i32
    return %arg0, %c0_i32 : i32, i32
  }
  func.func @transform_1(%arg0: i32) -> (i32, i32) {
    %c0_i32 = arith.constant 0 : i32
    %c0_i32_0 = arith.constant 0 : i32
    %c0_i32_1 = arith.constant 0 : i32
    return %c0_i32, %c0_i32_0 : i32, i32
  }
  func.func @transform_2(%arg0: i32) -> (i32, i32) {
    %c0_i32 = arith.constant 0 : i32
    %c0_i32_0 = arith.constant 0 : i32
    %c0_i32_1 = arith.constant 0 : i32
    return %c0_i32, %c0_i32_0 : i32, i32
  }
  func.func @transform_3(%arg0: i32) -> (i32, i32) {
    %c0_i32 = arith.constant 0 : i32
    %c0_i32_0 = arith.constant 0 : i32
    %c0_i32_1 = arith.constant 0 : i32
    return %c0_i32, %c0_i32_0 : i32, i32
  }
  func.func @transform_4(%arg0: i32) -> (i32, i32) {
    %c0_i32 = arith.constant 0 : i32
    %c0_i32_0 = arith.constant 0 : i32
    %c0_i32_1 = arith.constant 0 : i32
    return %c0_i32, %c0_i32_0 : i32, i32
  }
  func.func @transform_5(%arg0: i32) -> (i32, i32) {
    %c0_i32 = arith.constant 0 : i32
    %c0_i32_0 = arith.constant 0 : i32
    %c0_i32_1 = arith.constant 0 : i32
    return %c0_i32, %c0_i32_0 : i32, i32
  }
  func.func @transform_6(%arg0: i32) -> (i32, i32) {
    %c0_i32 = arith.constant 0 : i32
    %c0_i32_0 = arith.constant 0 : i32
    %c0_i32_1 = arith.constant 0 : i32
    return %c0_i32, %c0_i32_0 : i32, i32
  }
  func.func @transform_7(%arg0: i32) -> (i32, i32) {
    %c0_i32 = arith.constant 0 : i32
    %c0_i32_0 = arith.constant 0 : i32
    return %arg0, %c0_i32 : i32, i32
  }
}

</mosaic_0001>

<llo_original>
// kernel: dpl_mlp_forward.1
$region0: #{dpl_mlp_forward.1}
  #allocation0 [shape = 'u32[]', space=smem, size = 0x4, offset = 0x4, fixed_abs, tag = 'smem constant byte address 0x4 - core index']
  #allocation1 [shape = 'u32[144,128]{1,0:T(1,128)}', space=vmem, size = 0x12000, scoped, tag = 'internal scratch']
  %s0 = inlined_call_operand.vmem [shape: f32[64,32], index: 0, kind: input, shape index: {}]
  %s1 = inlined_call_operand.vmem [shape: bf16[32,512], index: 1, kind: input, shape index: {}]
  %s2 = inlined_call_operand.vmem [shape: f32[1,512], index: 2, kind: input, shape index: {}]
  %s3 = inlined_call_operand.hbm [shape: bf16[512,512], index: 3, kind: input, shape index: {}]
  %s4 = inlined_call_operand.vmem [shape: f32[1,512], index: 4, kind: input, shape index: {}]
  %s5 = inlined_call_operand.vmem [shape: bf16[512,8], index: 5, kind: input, shape index: {}]
  %s6 = inlined_call_operand.vmem [shape: f32[1,8], index: 6, kind: input, shape index: {}]
  %s7 = inlined_call_operand.vmem [shape: f32[64,8], index: 7, kind: output, shape index: {}]
  %s8 = sld [smem:[#allocation0]]
  $region42: #{dpl_mlp_forward.1} parent=0
    _
  %s10 = ssub.s32 1, %s8
  %s11 = scalar_select 0, %s10, %s8
  $region1: #{dpl_mlp_forward.1} parent=0
    #allocation2 [shape = 'u8[524288]{0}', space=vmem, size = 0x80000, scoped, tag = 'input window, operand 3, single buffered']
    #allocation3 [shape = 's32[1]{0}', space=sflag, size = 0x4, scoped, tag = 'scoped memory for dpl_mlp_forward.1']
    %12 = vsyncpa [#allocation3], 0
    // Predicated region
    $region2: #{dpl_mlp_forward.1} parent=1 // pred_check
      _
    $region3: #{dpl_mlp_forward.1} parent=1 // pred_check_branch
      %14 = sbr.rel (0) target = $region5
    $region4: #{dpl_mlp_forward.1} parent=1 // pred_region
      _
    $region5: #{dpl_mlp_forward.1} parent=1 // pred_fallthru
      _
    // Predicated region
    $region6: #{dpl_mlp_forward.1} parent=1 // pred_check
      _
    $region7: #{dpl_mlp_forward.1} parent=1 // pred_check_branch
      %16 = sbr.rel (0) target = $region9
    $region8: #{dpl_mlp_forward.1} parent=1 // pred_region
      _
    $region9: #{dpl_mlp_forward.1} parent=1 // pred_fallthru
      _
    // Predicated region
    $region10: #{dpl_mlp_forward.1} parent=1 // pred_check
      _
    $region11: #{dpl_mlp_forward.1} parent=1 // pred_check_branch
      %18 = sbr.rel (0) target = $region13
    $region12: #{dpl_mlp_forward.1} parent=1 // pred_region
      _
    $region13: #{dpl_mlp_forward.1} parent=1 // pred_fallthru
      _
    // Predicated region
    $region14: #{dpl_mlp_forward.1} parent=1 // pred_check
      _
    $region15: #{dpl_mlp_forward.1} parent=1 // pred_check_branch
      %20 = sbr.rel (0) target = $region17
    $region16: #{dpl_mlp_forward.1} parent=1 // pred_region
      %s22 = ssub.s32 16384, 16384
      %23 = vsyncadd [#allocation3], %s22
      %s24 = sshll.u32 [#allocation2], 4
      %s25 = int_to_ptr.vmem [resolvable:$true] %s24
      %30 = dma.hbm_to_vmem [thread:$0]  %s3, 16384, %s25, [#allocation3], 256, 256, 16
    $region17: #{dpl_mlp_forward.1} parent=1 // pred_fallthru
      _
    // Predicated region
    $region18: #{dpl_mlp_forward.1} parent=1 // pred_check
      _
    $region19: #{dpl_mlp_forward.1} parent=1 // pred_check_branch
      %32 = sbr.rel (0) target = $region21
    $region20: #{dpl_mlp_forward.1} parent=1 // pred_region
      _
    $region21: #{dpl_mlp_forward.1} parent=1 // pred_fallthru
      _
    // Predicated region
    $region22: #{dpl_mlp_forward.1} parent=1 // pred_check
      _
    $region23: #{dpl_mlp_forward.1} parent=1 // pred_check_branch
      %34 = sbr.rel (0) target = $region25
    $region24: #{dpl_mlp_forward.1} parent=1 // pred_region
      _
    $region25: #{dpl_mlp_forward.1} parent=1 // pred_fallthru
      _
    // Predicated region
    $region26: #{dpl_mlp_forward.1} parent=1 // pred_check
      _
    $region27: #{dpl_mlp_forward.1} parent=1 // pred_check_branch
      %36 = sbr.rel (0) target = $region29
    $region28: #{dpl_mlp_forward.1} parent=1 // pred_region
      _
    $region29: #{dpl_mlp_forward.1} parent=1 // pred_fallthru
      _
    // Predicated region
    $region30: #{dpl_mlp_forward.1} parent=1 // pred_check
      _
    $region31: #{dpl_mlp_forward.1} parent=1 // pred_check_branch
      %38 = sbr.rel (0) target = $region33
    $region32: #{dpl_mlp_forward.1} parent=1 // pred_region
      %39 = dma.done [#allocation3], 16384
    $region33: #{dpl_mlp_forward.1} parent=1 // pred_fallthru
      _
    %v41 = vld [vmem:[%s0] sm:$0xff]
    %v42 = vld [vmem:[%s0 + $0x8] sm:$0xff]
    %v43 = vld [vmem:[%s0 + $0x10] sm:$0xff]
    %v44 = vld [vmem:[%s0 + $0x18] sm:$0xff]
    %v45 = vld [vmem:[%s0 + $0x20] sm:$0xff]
    %v46 = vld [vmem:[%s0 + $0x28] sm:$0xff]
    %v47 = vld [vmem:[%s0 + $0x30] sm:$0xff]
    %v48 = vld [vmem:[%s0 + $0x38] sm:$0xff]
    %v49 = vpack.c.bf16 %v42, %v41
    %v50 = vpack.c.bf16 %v44, %v43
    %v51 = vpack.c.bf16 %v46, %v45
    %v52 = vpack.c.bf16 %v48, %v47
    %v53 = vld [vmem:[%s1] sm:$0xff]
    %v54 = vld [vmem:[%s1 + $0x8] sm:$0xff]
    %v55 = vld [vmem:[%s1 + $0x10] sm:$0xff]
    %v56 = vld [vmem:[%s1 + $0x18] sm:$0xff]
    %v57 = vld [vmem:[%s1 + $0x20] sm:$0xff]
    %v58 = vld [vmem:[%s1 + $0x28] sm:$0xff]
    %v59 = vld [vmem:[%s1 + $0x30] sm:$0xff]
    %v60 = vld [vmem:[%s1 + $0x38] sm:$0xff]
    %v61 = vld [vmem:[%s2] sm:$0xf]
    %v63 = vlaneseq
    %v64 = vshrl.u32 %v63, 7
    %v65 = vsub.s32 0, %v64
    %v66 = vrot.slane %v61, %v65
    %v67 = vlaneseq
    %v68 = vshrl.u32 %v67, 7
    %v69 = vsub.s32 1, %v68
    %v70 = vrot.slane %v61, %v69
    %v71 = vlaneseq
    %v72 = vshrl.u32 %v71, 7
    %v73 = vsub.s32 2, %v72
    %v74 = vrot.slane %v61, %v73
    %v75 = vlaneseq
    %v76 = vshrl.u32 %v75, 7
    %v77 = vsub.s32 3, %v76
    %v78 = vrot.slane %v61, %v77
    %v91 = vunpack.c.l.b16 %v53
    %v92 = vunpack.c.h.b16 %v53
    %v93 = vunpack.c.l.b16 %v54
    %v94 = vunpack.c.h.b16 %v54
    %v95 = vunpack.c.l.b16 %v55
    %v96 = vunpack.c.h.b16 %v55
    %v97 = vunpack.c.l.b16 %v56
    %v98 = vunpack.c.h.b16 %v56
    %v99 = vunpack.c.l.b16 %v57
    %v100 = vunpack.c.h.b16 %v57
    %v101 = vunpack.c.l.b16 %v58
    %v102 = vunpack.c.h.b16 %v58
    %v103 = vunpack.c.l.b16 %v59
    %v104 = vunpack.c.h.b16 %v59
    %v105 = vunpack.c.l.b16 %v60
    %v106 = vunpack.c.h.b16 %v60
    %v107 = vpack.c.b16 %v95, %v91
    %v108 = vpack.c.b16 %v96, %v92
    %v109 = vpack.c.b16 %v97, %v93
    %v110 = vpack.c.b16 %v98, %v94
    %v111 = vpack.c.b16 %v103, %v99
    %v112 = vpack.c.b16 %v104, %v100
    %v113 = vpack.c.b16 %v105, %v101
    %v114 = vpack.c.b16 %v106, %v102
    %vm123 = vcmask 261120
    %v125 = vsel %vm123, %v49, 0
    %v128 = vsel %vm123, %v50, 0
    %v131 = vsel %vm123, %v51, 0
    %v134 = vsel %vm123, %v52, 0
    %136 = vmatprep.subr.bf16.mxu0 %v108
    %137 = vmatpush1.bf16.msra.mxu0 %v107
    %138 = vmatprep.subr.bf16.mxu0 %v112
    %139 = vmatpush1.bf16.msra.mxu0 %v111
    %140 = vmatprep.subr.bf16.mxu0 0
    %141 = vmatpush1.bf16.msra.mxu0 0
    %142 = vmatprep.subr.bf16.mxu0 0
    %143 = vmatpush1.bf16.msra.mxu0 0
    %144 = vmatprep.subr.bf16.mxu0 0
    %145 = vmatpush1.bf16.msra.mxu0 0
    %146 = vmatprep.subr.bf16.mxu0 0
    %147 = vmatpush1.bf16.msra.mxu0 0
    %148 = vmatprep.subr.bf16.mxu0 0
    %149 = vmatpush1.bf16.msra.mxu0 0
    %150 = vmatprep.subr.bf16.mxu0 0
    %151 = vmatpush1.bf16.msra.mxu0 0
    %152 = vmatprep.subr.bf16.mxu0 0
    %153 = vmatpush1.bf16.msra.mxu0 0
    %154 = vmatprep.subr.bf16.mxu0 0
    %155 = vmatpush1.bf16.msra.mxu0 0
    %156 = vmatprep.subr.bf16.mxu0 0
    %157 = vmatpush1.bf16.msra.mxu0 0
    %158 = vmatprep.subr.bf16.mxu0 0
    %159 = vmatpush1.bf16.msra.mxu0 0
    %160 = vmatprep.subr.bf16.mxu0 0
    %161 = vmatpush1.bf16.msra.mxu0 0
    %162 = vmatprep.subr.bf16.mxu0 0
    %163 = vmatpush1.bf16.msra.mxu0 0
    %164 = vmatprep.subr.bf16.mxu0 0
    %165 = vmatpush1.bf16.msra.mxu0 0
    %166 = vmatprep.subr.bf16.mxu0 0
    %167 = vmatpush1.bf16.msra.mxu0 0
    %168 = vmatprep.mubr.bf16.mxu0 0
    %169 = vmatmul.mubr.bf16.gmra.mrb[0].mxu0 %v125
    %v170 = vpop.f32.mrb[0].mxu0
    %v171 = vadd.f32 %v66, %v170
    %v172 = vpop.f32.mrb[0].mxu0
    %v173 = vadd.f32 %v70, %v172
    %v174 = vpop.f32.mrb[0].mxu0
    %v175 = vadd.f32 %v66, %v174
    %v176 = vpop.f32.mrb[0].mxu0
    %v177 = vadd.f32 %v70, %v176
    %178 = vmatprep.mubr.bf16.mxu0 0
    %179 = vmatmul.mubr.bf16.gmra.mrb[0].mxu0 %v128
    %v180 = vpop.f32.mrb[0].mxu0
    %v181 = vadd.f32 %v66, %v180
    %v182 = vpop.f32.mrb[0].mxu0
    %v183 = vadd.f32 %v70, %v182
    %v184 = vpop.f32.mrb[0].mxu0
    %v185 = vadd.f32 %v66, %v184
    %v186 = vpop.f32.mrb[0].mxu0
    %v187 = vadd.f32 %v70, %v186
    %188 = vmatprep.mubr.bf16.mxu0 0
    %189 = vmatmul.mubr.bf16.gmra.mrb[0].mxu0 %v131
    %v190 = vpop.f32.mrb[0].mxu0
    %v191 = vadd.f32 %v66, %v190
    %v192 = vpop.f32.mrb[0].mxu0
    %v193 = vadd.f32 %v70, %v192
    %v194 = vpop.f32.mrb[0].mxu0
    %v195 = vadd.f32 %v66, %v194
    %v196 = vpop.f32.mrb[0].mxu0
    %v197 = vadd.f32 %v70, %v196
    %198 = vmatprep.mubr.bf16.mxu0 0
    %199 = vmatmul.mubr.bf16.gmra.mrb[0].mxu0 %v134
    %v200 = vpop.f32.mrb[0].mxu0
    %v201 = vadd.f32 %v66, %v200
    %v202 = vpop.f32.mrb[0].mxu0
    %v203 = vadd.f32 %v70, %v202
    %v204 = vpop.f32.mrb[0].mxu0
    %v205 = vadd.f32 %v66, %v204
    %v206 = vpop.f32.mrb[0].mxu0
    %v207 = vadd.f32 %v70, %v206
    %208 = vdwg.mxu0
    %209 = vmatprep.subr.bf16.mxu0 %v110
    %210 = vmatpush1.bf16.msra.mxu0 %v109
    %211 = vmatprep.subr.bf16.mxu0 %v114
    %212 = vmatpush1.bf16.msra.mxu0 %v113
    %213 = vmatprep.subr.bf16.mxu0 0
    %214 = vmatpush1.bf16.msra.mxu0 0
    %215 = vmatprep.subr.bf16.mxu0 0
    %216 = vmatpush1.bf16.msra.mxu0 0
    %217 = vmatprep.subr.bf16.mxu0 0
    %218 = vmatpush1.bf16.msra.mxu0 0
    %219 = vmatprep.subr.bf16.mxu0 0
    %220 = vmatpush1.bf16.msra.mxu0 0
    %221 = vmatprep.subr.bf16.mxu0 0
    %222 = vmatpush1.bf16.msra.mxu0 0
    %223 = vmatprep.subr.bf16.mxu0 0
    %224 = vmatpush1.bf16.msra.mxu0 0
    %225 = vmatprep.subr.bf16.mxu0 0
    %226 = vmatpush1.bf16.msra.mxu0 0
    %227 = vmatprep.subr.bf16.mxu0 0
    %228 = vmatpush1.bf16.msra.mxu0 0
    %229 = vmatprep.subr.bf16.mxu0 0
    %230 = vmatpush1.bf16.msra.mxu0 0
    %231 = vmatprep.subr.bf16.mxu0 0
    %232 = vmatpush1.bf16.msra.mxu0 0
    %233 = vmatprep.subr.bf16.mxu0 0
    %234 = vmatpush1.bf16.msra.mxu0 0
    %235 = vmatprep.subr.bf16.mxu0 0
    %236 = vmatpush1.bf16.msra.mxu0 0
    %237 = vmatprep.subr.bf16.mxu0 0
    %238 = vmatpush1.bf16.msra.mxu0 0
    %239 = vmatprep.subr.bf16.mxu0 0
    %240 = vmatpush1.bf16.msra.mxu0 0
    %241 = vmatprep.mubr.bf16.mxu0 0
    %242 = vmatmul.mubr.bf16.gmra.mrb[0].mxu0 %v125
    %v243 = vpop.f32.mrb[0].mxu0
    %v244 = vadd.f32 %v74, %v243
    %v245 = vpop.f32.mrb[0].mxu0
    %v246 = vadd.f32 %v78, %v245
    %v247 = vpop.f32.mrb[0].mxu0
    %v248 = vadd.f32 %v74, %v247
    %v249 = vpop.f32.mrb[0].mxu0
    %v250 = vadd.f32 %v78, %v249
    %251 = vmatprep.mubr.bf16.mxu0 0
    %252 = vmatmul.mubr.bf16.gmra.mrb[0].mxu0 %v128
    %v253 = vpop.f32.mrb[0].mxu0
    %v254 = vadd.f32 %v74, %v253
    %v255 = vpop.f32.mrb[0].mxu0
    %v256 = vadd.f32 %v78, %v255
    %v257 = vpop.f32.mrb[0].mxu0
    %v258 = vadd.f32 %v74, %v257
    %v259 = vpop.f32.mrb[0].mxu0
    %v260 = vadd.f32 %v78, %v259
    %261 = vmatprep.mubr.bf16.mxu0 0
    %262 = vmatmul.mubr.bf16.gmra.mrb[0].mxu0 %v131
    %v263 = vpop.f32.mrb[0].mxu0
    %v264 = vadd.f32 %v74, %v263
    %v265 = vpop.f32.mrb[0].mxu0
    %v266 = vadd.f32 %v78, %v265
    %v267 = vpop.f32.mrb[0].mxu0
    %v268 = vadd.f32 %v74, %v267
    %v269 = vpop.f32.mrb[0].mxu0
    %v270 = vadd.f32 %v78, %v269
    %271 = vmatprep.mubr.bf16.mxu0 0
    %272 = vmatmul.mubr.bf16.gmra.mrb[0].mxu0 %v134
    %v273 = vpop.f32.mrb[0].mxu0
    %v274 = vadd.f32 %v74, %v273
    %v275 = vpop.f32.mrb[0].mxu0
    %v276 = vadd.f32 %v78, %v275
    %v277 = vpop.f32.mrb[0].mxu0
    %v278 = vadd.f32 %v74, %v277
    %v279 = vpop.f32.mrb[0].mxu0
    %v280 = vadd.f32 %v78, %v279
    %281 = vdwg.mxu0
    %v282 = vmax.f32 %v171, 0.0
    %v283 = vmax.f32 %v173, 0.0
    %v284 = vmax.f32 %v244, 0.0
    %v285 = vmax.f32 %v246, 0.0
    %v286 = vmax.f32 %v175, 0.0
    %v287 = vmax.f32 %v177, 0.0
    %v288 = vmax.f32 %v248, 0.0
    %v289 = vmax.f32 %v250, 0.0
    %v290 = vmax.f32 %v181, 0.0
    %v291 = vmax.f32 %v183, 0.0
    %v292 = vmax.f32 %v254, 0.0
    %v293 = vmax.f32 %v256, 0.0
    %v294 = vmax.f32 %v185, 0.0
    %v295 = vmax.f32 %v187, 0.0
    %v296 = vmax.f32 %v258, 0.0
    %v297 = vmax.f32 %v260, 0.0
    %v298 = vmax.f32 %v191, 0.0
    %v299 = vmax.f32 %v193, 0.0
    %v300 = vmax.f32 %v264, 0.0
    %v301 = vmax.f32 %v266, 0.0
    %v302 = vmax.f32 %v195, 0.0
    %v303 = vmax.f32 %v197, 0.0
    %v304 = vmax.f32 %v268, 0.0
    %v305 = vmax.f32 %v270, 0.0
    %v306 = vmax.f32 %v201, 0.0
    %v307 = vmax.f32 %v203, 0.0
    %v308 = vmax.f32 %v274, 0.0
    %v309 = vmax.f32 %v276, 0.0
    %v310 = vmax.f32 %v205, 0.0
    %v311 = vmax.f32 %v207, 0.0
    %v312 = vmax.f32 %v278, 0.0
    %v313 = vmax.f32 %v280, 0.0
    %v314 = vpack.c.bf16 %v286, %v282
    %v315 = vpack.c.bf16 %v287, %v283
    %v316 = vpack.c.bf16 %v288, %v284
    %v317 = vpack.c.bf16 %v289, %v285
    %v318 = vpack.c.bf16 %v294, %v290
    %v319 = vpack.c.bf16 %v295, %v291
    %v320 = vpack.c.bf16 %v296, %v292
    %v321 = vpack.c.bf16 %v297, %v293
    %v322 = vpack.c.bf16 %v302, %v298
    %v323 = vpack.c.bf16 %v303, %v299
    %v324 = vpack.c.bf16 %v304, %v300
    %v325 = vpack.c.bf16 %v305, %v301
    %v326 = vpack.c.bf16 %v310, %v306
    %v327 = vpack.c.bf16 %v311, %v307
    %v328 = vpack.c.bf16 %v312, %v308
    %v329 = vpack.c.bf16 %v313, %v309
    %v330 = vld [vmem:[#allocation2] sm:$0xff]
    %v331 = vld [vmem:[#allocation2 + $0x8] sm:$0xff]
    %v332 = vld [vmem:[#allocation2 + $0x10] sm:$0xff]
    %v333 = vld [vmem:[#allocation2 + $0x18] sm:$0xff]
    %v334 = vld [vmem:[#allocation2 + $0x20] sm:$0xff]
    %v335 = vld [vmem:[#allocation2 + $0x28] sm:$0xff]
    %v336 = vld [vmem:[#allocation2 + $0x30] sm:$0xff]
    %v337 = vld [vmem:[#allocation2 + $0x38] sm:$0xff]
    %v338 = vld [vmem:[#allocation2 + $0x40] sm:$0xff]
    %v339 = vld [vmem:[#allocation2 + $0x48] sm:$0xff]
    %v340 = vld [vmem:[#allocation2 + $0x50] sm:$0xff]
    %v341 = vld [vmem:[#allocation2 + $0x58] sm:$0xff]
    %v342 = vld [vmem:[#allocation2 + $0x60] sm:$0xff]
    %v343 = vld [vmem:[#allocation2 + $0x68] sm:$0xff]
    %v344 = vld [vmem:[#allocation2 + $0x70] sm:$0xff]
    %v345 = vld [vmem:[#allocation2 + $0x78] sm:$0xff]
    %v346 = vld [vmem:[#allocation2 + $0x80] sm:$0xff]
    %v347 = vld [vmem:[#allocation2 + $0x88] sm:$0xff]
    %v348 = vld [vmem:[#allocation2 + $0x90] sm:$0xff]
    %v349 = vld [vmem:[#allocation2 + $0x98] sm:$0xff]
    %v350 = vld [vmem:[#allocation2 + $0xa0] sm:$0xff]
    %v351 = vld [vmem:[#allocation2 + $0xa8] sm:$0xff]
    %v352 = vld [vmem:[#allocation2 + $0xb0] sm:$0xff]
    %v353 = vld [vmem:[#allocation2 + $0xb8] sm:$0xff]
    %v354 = vld [vmem:[#allocation2 + $0xc0] sm:$0xff]
    %v355 = vld [vmem:[#allocation2 + $0xc8] sm:$0xff]
    %v356 = vld [vmem:[#allocation2 + $0xd0] sm:$0xff]
    %v357 = vld [vmem:[#allocation2 + $0xd8] sm:$0xff]
    %v358 = vld [vmem:[#allocation2 + $0xe0] sm:$0xff]
    %v359 = vld [vmem:[#allocation2 + $0xe8] sm:$0xff]
    %v360 = vld [vmem:[#allocation2 + $0xf0] sm:$0xff]
    %v361 = vld [vmem:[#allocation2 + $0xf8] sm:$0xff]
    %v362 = vld [vmem:[#allocation2 + $0x100] sm:$0xff]
    %v363 = vld [vmem:[#allocation2 + $0x108] sm:$0xff]
    %v364 = vld [vmem:[#allocation2 + $0x110] sm:$0xff]
    %v365 = vld [vmem:[#allocation2 + $0x118] sm:$0xff]
    %v366 = vld [vmem:[#allocation2 + $0x120] sm:$0xff]
    %v367 = vld [vmem:[#allocation2 + $0x128] sm:$0xff]
    %v368 = vld [vmem:[#allocation2 + $0x130] sm:$0xff]
    %v369 = vld [vmem:[#allocation2 + $0x138] sm:$0xff]
    %v370 = vld [vmem:[#allocation2 + $0x140] sm:$0xff]
    %v371 = vld [vmem:[#allocation2 + $0x148] sm:$0xff]
    %v372 = vld [vmem:[#allocation2 + $0x150] sm:$0xff]
    %v373 = vld [vmem:[#allocation2 + $0x158] sm:$0xff]
    %v374 = vld [vmem:[#allocation2 + $0x160] sm:$0xff]
    %v375 = vld [vmem:[#allocation2 + $0x168] sm:$0xff]
    %v376 = vld [vmem:[#allocation2 + $0x170] sm:$0xff]
    %v377 = vld [vmem:[#allocation2 + $0x178] sm:$0xff]
    %v378 = vld [vmem:[#allocation2 + $0x180] sm:$0xff]
    %v379 = vld [vmem:[#allocation2 + $0x188] sm:$0xff]
    %v380 = vld [vmem:[#allocation2 + $0x190] sm:$0xff]
    %v381 = vld [vmem:[#allocation2 + $0x198] sm:$0xff]
    %v382 = vld [vmem:[#allocation2 + $0x1a0] sm:$0xff]
    %v383 = vld [vmem:[#allocation2 + $0x1a8] sm:$0xff]
    %v384 = vld [vmem:[#allocation2 + $0x1b0] sm:$0xff]
    %v385 = vld [vmem:[#allocation2 + $0x1b8] sm:$0xff]
    %v386 = vld [vmem:[#allocation2 + $0x1c0] sm:$0xff]
    %v387 = vld [vmem:[#allocation2 + $0x1c8] sm:$0xff]
    %v388 = vld [vmem:[#allocation2 + $0x1d0] sm:$0xff]
    %v389 = vld [vmem:[#allocation2 + $0x1d8] sm:$0xff]
    %v390 = vld [vmem:[#allocation2 + $0x1e0] sm:$0xff]
    %v391 = vld [vmem:[#allocation2 + $0x1e8] sm:$0xff]
    %v392 = vld [vmem:[#allocation2 + $0x1f0] sm:$0xff]
    %v393 = vld [vmem:[#allocation2 + $0x1f8] sm:$0xff]
    %v394 = vld [vmem:[#allocation2 + $0x200] sm:$0xff]
    %v395 = vld [vmem:[#allocation2 + $0x208] sm:$0xff]
    %v396 = vld [vmem:[#allocation2 + $0x210] sm:$0xff]
    %v397 = vld [vmem:[#allocation2 + $0x218] sm:$0xff]
    %v398 = vld [vmem:[#allocation2 + $0x220] sm:$0xff]
    %v399 = vld [vmem:[#allocation2 + $0x228] sm:$0xff]
    %v400 = vld [vmem:[#allocation2 + $0x230] sm:$0xff]
    %v401 = vld [vmem:[#allocation2 + $0x238] sm:$0xff]
    %v402 = vld [vmem:[#allocation2 + $0x240] sm:$0xff]
    %v403 = vld [vmem:[#allocation2 + $0x248] sm:$0xff]
    %v404 = vld [vmem:[#allocation2 + $0x250] sm:$0xff]
    %v405 = vld [vmem:[#allocation2 + $0x258] sm:$0xff]
    %v406 = vld [vmem:[#allocation2 + $0x260] sm:$0xff]
    %v407 = vld [vmem:[#allocation2 + $0x268] sm:$0xff]
    %v408 = vld [vmem:[#allocation2 + $0x270] sm:$0xff]
    %v409 = vld [vmem:[#allocation2 + $0x278] sm:$0xff]
    %v410 = vld [vmem:[#allocation2 + $0x280] sm:$0xff]
    %v411 = vld [vmem:[#allocation2 + $0x288] sm:$0xff]
    %v412 = vld [vmem:[#allocation2 + $0x290] sm:$0xff]
    %v413 = vld [vmem:[#allocation2 + $0x298] sm:$0xff]
    %v414 = vld [vmem:[#allocation2 + $0x2a0] sm:$0xff]
    %v415 = vld [vmem:[#allocation2 + $0x2a8] sm:$0xff]
    %v416 = vld [vmem:[#allocation2 + $0x2b0] sm:$0xff]
    %v417 = vld [vmem:[#allocation2 + $0x2b8] sm:$0xff]
    %v418 = vld [vmem:[#allocation2 + $0x2c0] sm:$0xff]
    %v419 = vld [vmem:[#allocation2 + $0x2c8] sm:$0xff]
    %v420 = vld [vmem:[#allocation2 + $0x2d0] sm:$0xff]
    %v421 = vld [vmem:[#allocation2 + $0x2d8] sm:$0xff]
    %v422 = vld [vmem:[#allocation2 + $0x2e0] sm:$0xff]
    %v423 = vld [vmem:[#allocation2 + $0x2e8] sm:$0xff]
    %v424 = vld [vmem:[#allocation2 + $0x2f0] sm:$0xff]
    %v425 = vld [vmem:[#allocation2 + $0x2f8] sm:$0xff]
    %v426 = vld [vmem:[#allocation2 + $0x300] sm:$0xff]
    %v427 = vld [vmem:[#allocation2 + $0x308] sm:$0xff]
    %v428 = vld [vmem:[#allocation2 + $0x310] sm:$0xff]
    %v429 = vld [vmem:[#allocation2 + $0x318] sm:$0xff]
    %v430 = vld [vmem:[#allocation2 + $0x320] sm:$0xff]
    %v431 = vld [vmem:[#allocation2 + $0x328] sm:$0xff]
    %v432 = vld [vmem:[#allocation2 + $0x330] sm:$0xff]
    %v433 = vld [vmem:[#allocation2 + $0x338] sm:$0xff]
    %v434 = vld [vmem:[#allocation2 + $0x340] sm:$0xff]
    %v435 = vld [vmem:[#allocation2 + $0x348] sm:$0xff]
    %v436 = vld [vmem:[#allocation2 + $0x350] sm:$0xff]
    %v437 = vld [vmem:[#allocation2 + $0x358] sm:$0xff]
    %v438 = vld [vmem:[#allocation2 + $0x360] sm:$0xff]
    %v439 = vld [vmem:[#allocation2 + $0x368] sm:$0xff]
    %v440 = vld [vmem:[#allocation2 + $0x370] sm:$0xff]
    %v441 = vld [vmem:[#allocation2 + $0x378] sm:$0xff]
    %v442 = vld [vmem:[#allocation2 + $0x380] sm:$0xff]
    %v443 = vld [vmem:[#allocation2 + $0x388] sm:$0xff]
    %v444 = vld [vmem:[#allocation2 + $0x390] sm:$0xff]
    %v445 = vld [vmem:[#allocation2 + $0x398] sm:$0xff]
    %v446 = vld [vmem:[#allocation2 + $0x3a0] sm:$0xff]
    %v447 = vld [vmem:[#allocation2 + $0x3a8] sm:$0xff]
    %v448 = vld [vmem:[#allocation2 + $0x3b0] sm:$0xff]
    %v449 = vld [vmem:[#allocation2 + $0x3b8] sm:$0xff]
    %v450 = vld [vmem:[#allocation2 + $0x3c0] sm:$0xff]
    %v451 = vld [vmem:[#allocation2 + $0x3c8] sm:$0xff]
    %v452 = vld [vmem:[#allocation2 + $0x3d0] sm:$0xff]
    %v453 = vld [vmem:[#allocation2 + $0x3d8] sm:$0xff]
    %v454 = vld [vmem:[#allocation2 + $0x3e0] sm:$0xff]
    %v455 = vld [vmem:[#allocation2 + $0x3e8] sm:$0xff]
    %v456 = vld [vmem:[#allocation2 + $0x3f0] sm:$0xff]
    %v457 = vld [vmem:[#allocation2 + $0x3f8] sm:$0xff]
    %v458 = vld [vmem:[%s4] sm:$0xf]
    %v460 = vlaneseq
    %v461 = vshrl.u32 %v460, 7
    %v462 = vsub.s32 0, %v461
    %v463 = vrot.slane %v458, %v462
    %v464 = vlaneseq
    %v465 = vshrl.u32 %v464, 7
    %v466 = vsub.s32 1, %v465
    %v467 = vrot.slane %v458, %v466
    %v468 = vlaneseq
    %v469 = vshrl.u32 %v468, 7
    %v470 = vsub.s32 2, %v469
    %v471 = vrot.slane %v458, %v470
    %v472 = vlaneseq
    %v473 = vshrl.u32 %v472, 7
    %v474 = vsub.s32 3, %v473
    %v475 = vrot.slane %v458, %v474
    %v608 = vunpack.c.l.b16 %v330
    %v609 = vunpack.c.h.b16 %v330
    %v610 = vunpack.c.l.b16 %v331
    %v611 = vunpack.c.h.b16 %v331
    %v612 = vunpack.c.l.b16 %v332
    %v613 = vunpack.c.h.b16 %v332
    %v614 = vunpack.c.l.b16 %v333
    %v615 = vunpack.c.h.b16 %v333
    %v616 = vunpack.c.l.b16 %v334
    %v617 = vunpack.c.h.b16 %v334
    %v618 = vunpack.c.l.b16 %v335
    %v619 = vunpack.c.h.b16 %v335
    %v620 = vunpack.c.l.b16 %v336
    %v621 = vunpack.c.h.b16 %v336
    %v622 = vunpack.c.l.b16 %v337
    %v623 = vunpack.c.h.b16 %v337
    %v624 = vunpack.c.l.b16 %v338
    %v625 = vunpack.c.h.b16 %v338
    %v626 = vunpack.c.l.b16 %v339
    %v627 = vunpack.c.h.b16 %v339
    %v628 = vunpack.c.l.b16 %v340
    %v629 = vunpack.c.h.b16 %v340
    %v630 = vunpack.c.l.b16 %v341
    %v631 = vunpack.c.h.b16 %v341
    %v632 = vunpack.c.l.b16 %v342
    %v633 = vunpack.c.h.b16 %v342
    %v634 = vunpack.c.l.b16 %v343
    %v635 = vunpack.c.h.b16 %v343
    %v636 = vunpack.c.l.b16 %v344
    %v637 = vunpack.c.h.b16 %v344
    %v638 = vunpack.c.l.b16 %v345
    %v639 = vunpack.c.h.b16 %v345
    %v640 = vunpack.c.l.b16 %v346
    %v641 = vunpack.c.h.b16 %v346
    %v642 = vunpack.c.l.b16 %v347
    %v643 = vunpack.c.h.b16 %v347
    %v644 = vunpack.c.l.b16 %v348
    %v645 = vunpack.c.h.b16 %v348
    %v646 = vunpack.c.l.b16 %v349
    %v647 = vunpack.c.h.b16 %v349
    %v648 = vunpack.c.l.b16 %v350
    %v649 = vunpack.c.h.b16 %v350
    %v650 = vunpack.c.l.b16 %v351
    %v651 = vunpack.c.h.b16 %v351
    %v652 = vunpack.c.l.b16 %v352
    %v653 = vunpack.c.h.b16 %v352
    %v654 = vunpack.c.l.b16 %v353
    %v655 = vunpack.c.h.b16 %v353
    %v656 = vunpack.c.l.b16 %v354
    %v657 = vunpack.c.h.b16 %v354
    %v658 = vunpack.c.l.b16 %v355
    %v659 = vunpack.c.h.b16 %v355
    %v660 = vunpack.c.l.b16 %v356
    %v661 = vunpack.c.h.b16 %v356
    %v662 = vunpack.c.l.b16 %v357
    %v663 = vunpack.c.h.b16 %v357
    %v664 = vunpack.c.l.b16 %v358
    %v665 = vunpack.c.h.b16 %v358
    %v666 = vunpack.c.l.b16 %v359
    %v667 = vunpack.c.h.b16 %v359
    %v668 = vunpack.c.l.b16 %v360
    %v669 = vunpack.c.h.b16 %v360
    %v670 = vunpack.c.l.b16 %v361
    %v671 = vunpack.c.h.b16 %v361
    %v672 = vunpack.c.l.b16 %v362
    %v673 = vunpack.c.h.b16 %v362
    %v674 = vunpack.c.l.b16 %v363
    %v675 = vunpack.c.h.b16 %v363
    %v676 = vunpack.c.l.b16 %v364
    %v677 = vunpack.c.h.b16 %v364
    %v678 = vunpack.c.l.b16 %v365
    %v679 = vunpack.c.h.b16 %v365
    %v680 = vunpack.c.l.b16 %v366
    %v681 = vunpack.c.h.b16 %v366
    %v682 = vunpack.c.l.b16 %v367
    %v683 = vunpack.c.h.b16 %v367
    %v684 = vunpack.c.l.b16 %v368
    %v685 = vunpack.c.h.b16 %v368
    %v686 = vunpack.c.l.b16 %v369
    %v687 = vunpack.c.h.b16 %v369
    %v688 = vunpack.c.l.b16 %v370
    %v689 = vunpack.c.h.b16 %v370
    %v690 = vunpack.c.l.b16 %v371
    %v691 = vunpack.c.h.b16 %v371
    %v692 = vunpack.c.l.b16 %v372
    %v693 = vunpack.c.h.b16 %v372
    %v694 = vunpack.c.l.b16 %v373
    %v695 = vunpack.c.h.b16 %v373
    %v696 = vunpack.c.l.b16 %v374
    %v697 = vunpack.c.h.b16 %v374
    %v698 = vunpack.c.l.b16 %v375
    %v699 = vunpack.c.h.b16 %v375
    %v700 = vunpack.c.l.b16 %v376
    %v701 = vunpack.c.h.b16 %v376
    %v702 = vunpack.c.l.b16 %v377
    %v703 = vunpack.c.h.b16 %v377
    %v704 = vunpack.c.l.b16 %v378
    %v705 = vunpack.c.h.b16 %v378
    %v706 = vunpack.c.l.b16 %v379
    %v707 = vunpack.c.h.b16 %v379
    %v708 = vunpack.c.l.b16 %v380
    %v709 = vunpack.c.h.b16 %v380
    %v710 = vunpack.c.l.b16 %v381
    %v711 = vunpack.c.h.b16 %v381
    %v712 = vunpack.c.l.b16 %v382
    %v713 = vunpack.c.h.b16 %v382
    %v714 = vunpack.c.l.b16 %v383
    %v715 = vunpack.c.h.b16 %v383
    %v716 = vunpack.c.l.b16 %v384
    %v717 = vunpack.c.h.b16 %v384
    %v718 = vunpack.c.l.b16 %v385
    %v719 = vunpack.c.h.b16 %v385
    %v720 = vunpack.c.l.b16 %v386
    %v721 = vunpack.c.h.b16 %v386
    %v722 = vunpack.c.l.b16 %v387
    %v723 = vunpack.c.h.b16 %v387
    %v724 = vunpack.c.l.b16 %v388
    %v725 = vunpack.c.h.b16 %v388
    %v726 = vunpack.c.l.b16 %v389
    %v727 = vunpack.c.h.b16 %v389
    %v728 = vunpack.c.l.b16 %v390
    %v729 = vunpack.c.h.b16 %v390
    %v730 = vunpack.c.l.b16 %v391
    %v731 = vunpack.c.h.b16 %v391
    %v732 = vunpack.c.l.b16 %v392
    %v733 = vunpack.c.h.b16 %v392
    %v734 = vunpack.c.l.b16 %v393
    %v735 = vunpack.c.h.b16 %v393
    %v736 = vunpack.c.l.b16 %v394
    %v737 = vunpack.c.h.b16 %v394
    %v738 = vunpack.c.l.b16 %v395
    %v739 = vunpack.c.h.b16 %v395
    %v740 = vunpack.c.l.b16 %v396
    %v741 = vunpack.c.h.b16 %v396
    %v742 = vunpack.c.l.b16 %v397
    %v743 = vunpack.c.h.b16 %v397
    %v744 = vunpack.c.l.b16 %v398
    %v745 = vunpack.c.h.b16 %v398
    %v746 = vunpack.c.l.b16 %v399
    %v747 = vunpack.c.h.b16 %v399
    %v748 = vunpack.c.l.b16 %v400
    %v749 = vunpack.c.h.b16 %v400
    %v750 = vunpack.c.l.b16 %v401
    %v751 = vunpack.c.h.b16 %v401
    %v752 = vunpack.c.l.b16 %v402
    %v753 = vunpack.c.h.b16 %v402
    %v754 = vunpack.c.l.b16 %v403
    %v755 = vunpack.c.h.b16 %v403
    %v756 = vunpack.c.l.b16 %v404
    %v757 = vunpack.c.h.b16 %v404
    %v758 = vunpack.c.l.b16 %v405
    %v759 = vunpack.c.h.b16 %v405
    %v760 = vunpack.c.l.b16 %v406
    %v761 = vunpack.c.h.b16 %v406
    %v762 = vunpack.c.l.b16 %v407
    %v763 = vunpack.c.h.b16 %v407
    %v764 = vunpack.c.l.b16 %v408
    %v765 = vunpack.c.h.b16 %v408
    %v766 = vunpack.c.l.b16 %v409
    %v767 = vunpack.c.h.b16 %v409
    %v768 = vunpack.c.l.b16 %v410
    %v769 = vunpack.c.h.b16 %v410
    %v770 = vunpack.c.l.b16 %v411
    %v771 = vunpack.c.h.b16 %v411
    %v772 = vunpack.c.l.b16 %v412
    %v773 = vunpack.c.h.b16 %v412
    %v774 = vunpack.c.l.b16 %v413
    %v775 = vunpack.c.h.b16 %v413
    %v776 = vunpack.c.l.b16 %v414
    %v777 = vunpack.c.h.b16 %v414
    %v778 = vunpack.c.l.b16 %v415
    %v779 = vunpack.c.h.b16 %v415
    %v780 = vunpack.c.l.b16 %v416
    %v781 = vunpack.c.h.b16 %v416
    %v782 = vunpack.c.l.b16 %v417
    %v783 = vunpack.c.h.b16 %v417
    %v784 = vunpack.c.l.b16 %v418
    %v785 = vunpack.c.h.b16 %v418
    %v786 = vunpack.c.l.b16 %v419
    %v787 = vunpack.c.h.b16 %v419
    %v788 = vunpack.c.l.b16 %v420
    %v789 = vunpack.c.h.b16 %v420
    %v790 = vunpack.c.l.b16 %v421
    %v791 = vunpack.c.h.b16 %v421
    %v792 = vunpack.c.l.b16 %v422
    %v793 = vunpack.c.h.b16 %v422
    %v794 = vunpack.c.l.b16 %v423
    %v795 = vunpack.c.h.b16 %v423
    %v796 = vunpack.c.l.b16 %v424
    %v797 = vunpack.c.h.b16 %v424
    %v798 = vunpack.c.l.b16 %v425
    %v799 = vunpack.c.h.b16 %v425
    %v800 = vunpack.c.l.b16 %v426
    %v801 = vunpack.c.h.b16 %v426
    %v802 = vunpack.c.l.b16 %v427
    %v803 = vunpack.c.h.b16 %v427
    %v804 = vunpack.c.l.b16 %v428
    %v805 = vunpack.c.h.b16 %v428
    %v806 = vunpack.c.l.b16 %v429
    %v807 = vunpack.c.h.b16 %v429
    %v808 = vunpack.c.l.b16 %v430
    %v809 = vunpack.c.h.b16 %v430
    %v810 = vunpack.c.l.b16 %v431
    %v811 = vunpack.c.h.b16 %v431
    %v812 = vunpack.c.l.b16 %v432
    %v813 = vunpack.c.h.b16 %v432
    %v814 = vunpack.c.l.b16 %v433
    %v815 = vunpack.c.h.b16 %v433
    %v816 = vunpack.c.l.b16 %v434
    %v817 = vunpack.c.h.b16 %v434
    %v818 = vunpack.c.l.b16 %v435
    %v819 = vunpack.c.h.b16 %v435
    %v820 = vunpack.c.l.b16 %v436
    %v821 = vunpack.c.h.b16 %v436
    %v822 = vunpack.c.l.b16 %v437
    %v823 = vunpack.c.h.b16 %v437
    %v824 = vunpack.c.l.b16 %v438
    %v825 = vunpack.c.h.b16 %v438
    %v826 = vunpack.c.l.b16 %v439
    %v827 = vunpack.c.h.b16 %v439
    %v828 = vunpack.c.l.b16 %v440
    %v829 = vunpack.c.h.b16 %v440
    %v830 = vunpack.c.l.b16 %v441
    %v831 = vunpack.c.h.b16 %v441
    %v832 = vunpack.c.l.b16 %v442
    %v833 = vunpack.c.h.b16 %v442
    %v834 = vunpack.c.l.b16 %v443
    %v835 = vunpack.c.h.b16 %v443
    %v836 = vunpack.c.l.b16 %v444
    %v837 = vunpack.c.h.b16 %v444
    %v838 = vunpack.c.l.b16 %v445
    %v839 = vunpack.c.h.b16 %v445
    %v840 = vunpack.c.l.b16 %v446
    %v841 = vunpack.c.h.b16 %v446
    %v842 = vunpack.c.l.b16 %v447
    %v843 = vunpack.c.h.b16 %v447
    %v844 = vunpack.c.l.b16 %v448
    %v845 = vunpack.c.h.b16 %v448
    %v846 = vunpack.c.l.b16 %v449
    %v847 = vunpack.c.h.b16 %v449
    %v848 = vunpack.c.l.b16 %v450
    %v849 = vunpack.c.h.b16 %v450
    %v850 = vunpack.c.l.b16 %v451
    %v851 = vunpack.c.h.b16 %v451
    %v852 = vunpack.c.l.b16 %v452
    %v853 = vunpack.c.h.b16 %v452
    %v854 = vunpack.c.l.b16 %v453
    %v855 = vunpack.c.h.b16 %v453
    %v856 = vunpack.c.l.b16 %v454
    %v857 = vunpack.c.h.b16 %v454
    %v858 = vunpack.c.l.b16 %v455
    %v859 = vunpack.c.h.b16 %v455
    %v860 = vunpack.c.l.b16 %v456
    %v861 = vunpack.c.h.b16 %v456
    %v862 = vunpack.c.l.b16 %v457
    %v863 = vunpack.c.h.b16 %v457
    %v864 = vpack.c.b16 %v612, %v608
    %v865 = vpack.c.b16 %v613, %v609
    %v866 = vpack.c.b16 %v614, %v610
    %v867 = vpack.c.b16 %v615, %v611
    %v868 = vpack.c.b16 %v620, %v616
    %v869 = vpack.c.b16 %v621, %v617
    %v870 = vpack.c.b16 %v622, %v618
    %v871 = vpack.c.b16 %v623, %v619
    %v872 = vpack.c.b16 %v628, %v624
    %v873 = vpack.c.b16 %v629, %v625
    %v874 = vpack.c.b16 %v630, %v626
    %v875 = vpack.c.b16 %v631, %v627
    %v876 = vpack.c.b16 %v636, %v632
    %v877 = vpack.c.b16 %v637, %v633
    %v878 = vpack.c.b16 %v638, %v634
    %v879 = vpack.c.b16 %v639, %v635
    %v880 = vpack.c.b16 %v644, %v640
    %v881 = vpack.c.b16 %v645, %v641
    %v882 = vpack.c.b16 %v646, %v642
    %v883 = vpack.c.b16 %v647, %v643
    %v884 = vpack.c.b16 %v652, %v648
    %v885 = vpack.c.b16 %v653, %v649
    %v886 = vpack.c.b16 %v654, %v650
    %v887 = vpack.c.b16 %v655, %v651
    %v888 = vpack.c.b16 %v660, %v656
    %v889 = vpack.c.b16 %v661, %v657
    %v890 = vpack.c.b16 %v662, %v658
    %v891 = vpack.c.b16 %v663, %v659
    %v892 = vpack.c.b16 %v668, %v664
    %v893 = vpack.c.b16 %v669, %v665
    %v894 = vpack.c.b16 %v670, %v666
    %v895 = vpack.c.b16 %v671, %v667
    %v896 = vpack.c.b16 %v676, %v672
    %v897 = vpack.c.b16 %v677, %v673
    %v898 = vpack.c.b16 %v678, %v674
    %v899 = vpack.c.b16 %v679, %v675
    %v900 = vpack.c.b16 %v684, %v680
    %v901 = vpack.c.b16 %v685, %v681
    %v902 = vpack.c.b16 %v686, %v682
    %v903 = vpack.c.b16 %v687, %v683
    %v904 = vpack.c.b16 %v692, %v688
    %v905 = vpack.c.b16 %v693, %v689
    %v906 = vpack.c.b16 %v694, %v690
    %v907 = vpack.c.b16 %v695, %v691
    %v908 = vpack.c.b16 %v700, %v696
    %v909 = vpack.c.b16 %v701, %v697
    %v910 = vpack.c.b16 %v702, %v698
    %v911 = vpack.c.b16 %v703, %v699
    %v912 = vpack.c.b16 %v708, %v704
    %v913 = vpack.c.b16 %v709, %v705
    %v914 = vpack.c.b16 %v710, %v706
    %v915 = vpack.c.b16 %v711, %v707
    %v916 = vpack.c.b16 %v716, %v712
    %v917 = vpack.c.b16 %v717, %v713
    %v918 = vpack.c.b16 %v718, %v714
    %v919 = vpack.c.b16 %v719, %v715
    %v920 = vpack.c.b16 %v724, %v720
    %v921 = vpack.c.b16 %v725, %v721
    %v922 = vpack.c.b16 %v726, %v722
    %v923 = vpack.c.b16 %v727, %v723
    %v924 = vpack.c.b16 %v732, %v728
    %v925 = vpack.c.b16 %v733, %v729
    %v926 = vpack.c.b16 %v734, %v730
    %v927 = vpack.c.b16 %v735, %v731
    %v928 = vpack.c.b16 %v740, %v736
    %v929 = vpack.c.b16 %v741, %v737
    %v930 = vpack.c.b16 %v742, %v738
    %v931 = vpack.c.b16 %v743, %v739
    %v932 = vpack.c.b16 %v748, %v744
    %v933 = vpack.c.b16 %v749, %v745
    %v934 = vpack.c.b16 %v750, %v746
    %v935 = vpack.c.b16 %v751, %v747
    %v936 = vpack.c.b16 %v756, %v752
    %v937 = vpack.c.b16 %v757, %v753
    %v938 = vpack.c.b16 %v758, %v754
    %v939 = vpack.c.b16 %v759, %v755
    %v940 = vpack.c.b16 %v764, %v760
    %v941 = vpack.c.b16 %v765, %v761
    %v942 = vpack.c.b16 %v766, %v762
    %v943 = vpack.c.b16 %v767, %v763
    %v944 = vpack.c.b16 %v772, %v768
    %v945 = vpack.c.b16 %v773, %v769
    %v946 = vpack.c.b16 %v774, %v770
    %v947 = vpack.c.b16 %v775, %v771
    %v948 = vpack.c.b16 %v780, %v776
    %v949 = vpack.c.b16 %v781, %v777
    %v950 = vpack.c.b16 %v782, %v778
    %v951 = vpack.c.b16 %v783, %v779
    %v952 = vpack.c.b16 %v788, %v784
    %v953 = vpack.c.b16 %v789, %v785
    %v954 = vpack.c.b16 %v790, %v786
    %v955 = vpack.c.b16 %v791, %v787
    %v956 = vpack.c.b16 %v796, %v792
    %v957 = vpack.c.b16 %v797, %v793
    %v958 = vpack.c.b16 %v798, %v794
    %v959 = vpack.c.b16 %v799, %v795
    %v960 = vpack.c.b16 %v804, %v800
    %v961 = vpack.c.b16 %v805, %v801
    %v962 = vpack.c.b16 %v806, %v802
    %v963 = vpack.c.b16 %v807, %v803
    %v964 = vpack.c.b16 %v812, %v808
    %v965 = vpack.c.b16 %v813, %v809
    %v966 = vpack.c.b16 %v814, %v810
    %v967 = vpack.c.b16 %v815, %v811
    %v968 = vpack.c.b16 %v820, %v816
    %v969 = vpack.c.b16 %v821, %v817
    %v970 = vpack.c.b16 %v822, %v818
    %v971 = vpack.c.b16 %v823, %v819
    %v972 = vpack.c.b16 %v828, %v824
    %v973 = vpack.c.b16 %v829, %v825
    %v974 = vpack.c.b16 %v830, %v826
    %v975 = vpack.c.b16 %v831, %v827
    %v976 = vpack.c.b16 %v836, %v832
    %v977 = vpack.c.b16 %v837, %v833
    %v978 = vpack.c.b16 %v838, %v834
    %v979 = vpack.c.b16 %v839, %v835
    %v980 = vpack.c.b16 %v844, %v840
    %v981 = vpack.c.b16 %v845, %v841
    %v982 = vpack.c.b16 %v846, %v842
    %v983 = vpack.c.b16 %v847, %v843
    %v984 = vpack.c.b16 %v852, %v848
    %v985 = vpack.c.b16 %v853, %v849
    %v986 = vpack.c.b16 %v854, %v850
    %v987 = vpack.c.b16 %v855, %v851
    %v988 = vpack.c.b16 %v860, %v856
    %v989 = vpack.c.b16 %v861, %v857
    %v990 = vpack.c.b16 %v862, %v858
    %v991 = vpack.c.b16 %v863, %v859
    %1120 = vmatprep.subr.bf16.mxu0 %v865
    %1121 = vmatpush1.bf16.msra.mxu0 %v864
    %1122 = vmatprep.subr.bf16.mxu0 %v869
    %1123 = vmatpush1.bf16.msra.mxu0 %v868
    %1124 = vmatprep.subr.bf16.mxu0 %v873
    %1125 = vmatpush1.bf16.msra.mxu0 %v872
    %1126 = vmatprep.subr.bf16.mxu0 %v877
    %1127 = vmatpush1.bf16.msra.mxu0 %v876
    %1128 = vmatprep.subr.bf16.mxu0 %v881
    %1129 = vmatpush1.bf16.msra.mxu0 %v880
    %1130 = vmatprep.subr.bf16.mxu0 %v885
    %1131 = vmatpush1.bf16.msra.mxu0 %v884
    %1132 = vmatprep.subr.bf16.mxu0 %v889
    %1133 = vmatpush1.bf16.msra.mxu0 %v888
    %1134 = vmatprep.subr.bf16.mxu0 %v893
    %1135 = vmatpush1.bf16.msra.mxu0 %v892
    %1136 = vmatprep.subr.bf16.mxu0 %v897
    %1137 = vmatpush1.bf16.msra.mxu0 %v896
    %1138 = vmatprep.subr.bf16.mxu0 %v901
    %1139 = vmatpush1.bf16.msra.mxu0 %v900
    %1140 = vmatprep.subr.bf16.mxu0 %v905
    %1141 = vmatpush1.bf16.msra.mxu0 %v904
    %1142 = vmatprep.subr.bf16.mxu0 %v909
    %1143 = vmatpush1.bf16.msra.mxu0 %v908
    %1144 = vmatprep.subr.bf16.mxu0 %v913
    %1145 = vmatpush1.bf16.msra.mxu0 %v912
    %1146 = vmatprep.subr.bf16.mxu0 %v917
    %1147 = vmatpush1.bf16.msra.mxu0 %v916
    %1148 = vmatprep.subr.bf16.mxu0 %v921
    %1149 = vmatpush1.bf16.msra.mxu0 %v920
    %1150 = vmatprep.subr.bf16.mxu0 %v925
    %1151 = vmatpush1.bf16.msra.mxu0 %v924
    %1152 = vmatprep.mubr.bf16.mxu0 %v315
    %1153 = vmatmul.mubr.bf16.gmra.mrb[0].mxu0 %v314
    %v1154 = vpop.f32.mrb[0].mxu0
    %v1155 = vadd.f32 %v463, %v1154
    %v1156 = vpop.f32.mrb[0].mxu0
    %v1157 = vadd.f32 %v467, %v1156
    %v1158 = vpop.f32.mrb[0].mxu0
    %v1159 = vadd.f32 %v463, %v1158
    %v1160 = vpop.f32.mrb[0].mxu0
    %v1161 = vadd.f32 %v467, %v1160
    %1162 = vmatprep.mubr.bf16.mxu0 %v319
    %1163 = vmatmul.mubr.bf16.gmra.mrb[0].mxu0 %v318
    %v1164 = vpop.f32.mrb[0].mxu0
    %v1165 = vadd.f32 %v463, %v1164
    %v1166 = vpop.f32.mrb[0].mxu0
    %v1167 = vadd.f32 %v467, %v1166
    %v1168 = vpop.f32.mrb[0].mxu0
    %v1169 = vadd.f32 %v463, %v1168
    %v1170 = vpop.f32.mrb[0].mxu0
    %v1171 = vadd.f32 %v467, %v1170
    %1172 = vmatprep.mubr.bf16.mxu0 %v323
    %1173 = vmatmul.mubr.bf16.gmra.mrb[0].mxu0 %v322
    %v1174 = vpop.f32.mrb[0].mxu0
    %v1175 = vadd.f32 %v463, %v1174
    %v1176 = vpop.f32.mrb[0].mxu0
    %v1177 = vadd.f32 %v467, %v1176
    %v1178 = vpop.f32.mrb[0].mxu0
    %v1179 = vadd.f32 %v463, %v1178
    %v1180 = vpop.f32.mrb[0].mxu0
    %v1181 = vadd.f32 %v467, %v1180
    %1182 = vmatprep.mubr.bf16.mxu0 %v327
    %1183 = vmatmul.mubr.bf16.gmra.mrb[0].mxu0 %v326
    %v1184 = vpop.f32.mrb[0].mxu0
    %v1185 = vadd.f32 %v463, %v1184
    %v1186 = vpop.f32.mrb[0].mxu0
    %v1187 = vadd.f32 %v467, %v1186
    %v1188 = vpop.f32.mrb[0].mxu0
    %v1189 = vadd.f32 %v463, %v1188
    %v1190 = vpop.f32.mrb[0].mxu0
    %v1191 = vadd.f32 %v467, %v1190
    %1192 = vdwg.mxu0
    %1193 = vmatprep.subr.bf16.mxu0 %v929
    %1194 = vmatpush1.bf16.msra.mxu0 %v928
    %1195 = vmatprep.subr.bf16.mxu0 %v933
    %1196 = vmatpush1.bf16.msra.mxu0 %v932
    %1197 = vmatprep.subr.bf16.mxu0 %v937
    %1198 = vmatpush1.bf16.msra.mxu0 %v936
    %1199 = vmatprep.subr.bf16.mxu0 %v941
    %1200 = vmatpush1.bf16.msra.mxu0 %v940
    %1201 = vmatprep.subr.bf16.mxu0 %v945
    %1202 = vmatpush1.bf16.msra.mxu0 %v944
    %1203 = vmatprep.subr.bf16.mxu0 %v949
    %1204 = vmatpush1.bf16.msra.mxu0 %v948
    %1205 = vmatprep.subr.bf16.mxu0 %v953
    %1206 = vmatpush1.bf16.msra.mxu0 %v952
    %1207 = vmatprep.subr.bf16.mxu0 %v957
    %1208 = vmatpush1.bf16.msra.mxu0 %v956
    %1209 = vmatprep.subr.bf16.mxu0 %v961
    %1210 = vmatpush1.bf16.msra.mxu0 %v960
    %1211 = vmatprep.subr.bf16.mxu0 %v965
    %1212 = vmatpush1.bf16.msra.mxu0 %v964
    %1213 = vmatprep.subr.bf16.mxu0 %v969
    %1214 = vmatpush1.bf16.msra.mxu0 %v968
    %1215 = vmatprep.subr.bf16.mxu0 %v973
    %1216 = vmatpush1.bf16.msra.mxu0 %v972
    %1217 = vmatprep.subr.bf16.mxu0 %v977
    %1218 = vmatpush1.bf16.msra.mxu0 %v976
    %1219 = vmatprep.subr.bf16.mxu0 %v981
    %1220 = vmatpush1.bf16.msra.mxu0 %v980
    %1221 = vmatprep.subr.bf16.mxu0 %v985
    %1222 = vmatpush1.bf16.msra.mxu0 %v984
    %1223 = vmatprep.subr.bf16.mxu0 %v989
    %1224 = vmatpush1.bf16.msra.mxu0 %v988
    %1225 = vmatprep.mubr.bf16.mxu0 %v317
    %1226 = vmatmul.mubr.bf16.gmra.mrb[0].mxu0 %v316
    %v1227 = vpop.f32.mrb[0].mxu0
    %v1228 = vadd.f32 %v1155, %v1227
    %v1229 = vpop.f32.mrb[0].mxu0
    %v1230 = vadd.f32 %v1157, %v1229
    %v1231 = vpop.f32.mrb[0].mxu0
    %v1232 = vadd.f32 %v1159, %v1231
    %v1233 = vpop.f32.mrb[0].mxu0
    %v1234 = vadd.f32 %v1161, %v1233
    %1235 = vmatprep.mubr.bf16.mxu0 %v321
    %1236 = vmatmul.mubr.bf16.gmra.mrb[0].mxu0 %v320
    %v1237 = vpop.f32.mrb[0].mxu0
    %v1238 = vadd.f32 %v1165, %v1237
    %v1239 = vpop.f32.mrb[0].mxu0
    %v1240 = vadd.f32 %v1167, %v1239
    %v1241 = vpop.f32.mrb[0].mxu0
    %v1242 = vadd.f32 %v1169, %v1241
    %v1243 = vpop.f32.mrb[0].mxu0
    %v1244 = vadd.f32 %v1171, %v1243
    %1245 = vmatprep.mubr.bf16.mxu0 %v325
    %1246 = vmatmul.mubr.bf16.gmra.mrb[0].mxu0 %v324
    %v1247 = vpop.f32.mrb[0].mxu0
    %v1248 = vadd.f32 %v1175, %v1247
    %v1249 = vpop.f32.mrb[0].mxu0
    %v1250 = vadd.f32 %v1177, %v1249
    %v1251 = vpop.f32.mrb[0].mxu0
    %v1252 = vadd.f32 %v1179, %v1251
    %v1253 = vpop.f32.mrb[0].mxu0
    %v1254 = vadd.f32 %v1181, %v1253
    %1255 = vmatprep.mubr.bf16.mxu0 %v329
    %1256 = vmatmul.mubr.bf16.gmra.mrb[0].mxu0 %v328
    %v1257 = vpop.f32.mrb[0].mxu0
    %v1258 = vadd.f32 %v1185, %v1257
    %v1259 = vpop.f32.mrb[0].mxu0
    %v1260 = vadd.f32 %v1187, %v1259
    %v1261 = vpop.f32.mrb[0].mxu0
    %v1262 = vadd.f32 %v1189, %v1261
    %v1263 = vpop.f32.mrb[0].mxu0
    %v1264 = vadd.f32 %v1191, %v1263
    %1265 = vdwg.mxu0
    %1266 = vmatprep.subr.bf16.mxu0 %v867
    %1267 = vmatpush1.bf16.msra.mxu0 %v866
    %1268 = vmatprep.subr.bf16.mxu0 %v871
    %1269 = vmatpush1.bf16.msra.mxu0 %v870
    %1270 = vmatprep.subr.bf16.mxu0 %v875
    %1271 = vmatpush1.bf16.msra.mxu0 %v874
    %1272 = vmatprep.subr.bf16.mxu0 %v879
    %1273 = vmatpush1.bf16.msra.mxu0 %v878
    %1274 = vmatprep.subr.bf16.mxu0 %v883
    %1275 = vmatpush1.bf16.msra.mxu0 %v882
    %1276 = vmatprep.subr.bf16.mxu0 %v887
    %1277 = vmatpush1.bf16.msra.mxu0 %v886
    %1278 = vmatprep.subr.bf16.mxu0 %v891
    %1279 = vmatpush1.bf16.msra.mxu0 %v890
    %1280 = vmatprep.subr.bf16.mxu0 %v895
    %1281 = vmatpush1.bf16.msra.mxu0 %v894
    %1282 = vmatprep.subr.bf16.mxu0 %v899
    %1283 = vmatpush1.bf16.msra.mxu0 %v898
    %1284 = vmatprep.subr.bf16.mxu0 %v903
    %1285 = vmatpush1.bf16.msra.mxu0 %v902
    %1286 = vmatprep.subr.bf16.mxu0 %v907
    %1287 = vmatpush1.bf16.msra.mxu0 %v906
    %1288 = vmatprep.subr.bf16.mxu0 %v911
    %1289 = vmatpush1.bf16.msra.mxu0 %v910
    %1290 = vmatprep.subr.bf16.mxu0 %v915
    %1291 = vmatpush1.bf16.msra.mxu0 %v914
    %1292 = vmatprep.subr.bf16.mxu0 %v919
    %1293 = vmatpush1.bf16.msra.mxu0 %v918
    %1294 = vmatprep.subr.bf16.mxu0 %v923
    %1295 = vmatpush1.bf16.msra.mxu0 %v922
    %1296 = vmatprep.subr.bf16.mxu0 %v927
    %1297 = vmatpush1.bf16.msra.mxu0 %v926
    %1298 = vmatprep.mubr.bf16.mxu0 %v315
    %1299 = vmatmul.mubr.bf16.gmra.mrb[0].mxu0 %v314
    %v1300 = vpop.f32.mrb[0].mxu0
    %v1301 = vadd.f32 %v471, %v1300
    %v1302 = vpop.f32.mrb[0].mxu0
    %v1303 = vadd.f32 %v475, %v1302
    %v1304 = vpop.f32.mrb[0].mxu0
    %v1305 = vadd.f32 %v471, %v1304
    %v1306 = vpop.f32.mrb[0].mxu0
    %v1307 = vadd.f32 %v475, %v1306
    %1308 = vmatprep.mubr.bf16.mxu0 %v319
    %1309 = vmatmul.mubr.bf16.gmra.mrb[0].mxu0 %v318
    %v1310 = vpop.f32.mrb[0].mxu0
    %v1311 = vadd.f32 %v471, %v1310
    %v1312 = vpop.f32.mrb[0].mxu0
    %v1313 = vadd.f32 %v475, %v1312
    %v1314 = vpop.f32.mrb[0].mxu0
    %v1315 = vadd.f32 %v471, %v1314
    %v1316 = vpop.f32.mrb[0].mxu0
    %v1317 = vadd.f32 %v475, %v1316
    %1318 = vmatprep.mubr.bf16.mxu0 %v323
    %1319 = vmatmul.mubr.bf16.gmra.mrb[0].mxu0 %v322
    %v1320 = vpop.f32.mrb[0].mxu0
    %v1321 = vadd.f32 %v471, %v1320
    %v1322 = vpop.f32.mrb[0].mxu0
    %v1323 = vadd.f32 %v475, %v1322
    %v1324 = vpop.f32.mrb[0].mxu0
    %v1325 = vadd.f32 %v471, %v1324
    %v1326 = vpop.f32.mrb[0].mxu0
    %v1327 = vadd.f32 %v475, %v1326
    %1328 = vmatprep.mubr.bf16.mxu0 %v327
    %1329 = vmatmul.mubr.bf16.gmra.mrb[0].mxu0 %v326
    %v1330 = vpop.f32.mrb[0].mxu0
    %v1331 = vadd.f32 %v471, %v1330
    %v1332 = vpop.f32.mrb[0].mxu0
    %v1333 = vadd.f32 %v475, %v1332
    %v1334 = vpop.f32.mrb[0].mxu0
    %v1335 = vadd.f32 %v471, %v1334
    %v1336 = vpop.f32.mrb[0].mxu0
    %v1337 = vadd.f32 %v475, %v1336
    %1338 = vdwg.mxu0
    %1339 = vmatprep.subr.bf16.mxu0 %v931
    %1340 = vmatpush1.bf16.msra.mxu0 %v930
    %1341 = vmatprep.subr.bf16.mxu0 %v935
    %1342 = vmatpush1.bf16.msra.mxu0 %v934
    %1343 = vmatprep.subr.bf16.mxu0 %v939
    %1344 = vmatpush1.bf16.msra.mxu0 %v938
    %1345 = vmatprep.subr.bf16.mxu0 %v943
    %1346 = vmatpush1.bf16.msra.mxu0 %v942
    %1347 = vmatprep.subr.bf16.mxu0 %v947
    %1348 = vmatpush1.bf16.msra.mxu0 %v946
    %1349 = vmatprep.subr.bf16.mxu0 %v951
    %1350 = vmatpush1.bf16.msra.mxu0 %v950
    %1351 = vmatprep.subr.bf16.mxu0 %v955
    %1352 = vmatpush1.bf16.msra.mxu0 %v954
    %1353 = vmatprep.subr.bf16.mxu0 %v959
    %1354 = vmatpush1.bf16.msra.mxu0 %v958
    %1355 = vmatprep.subr.bf16.mxu0 %v963
    %1356 = vmatpush1.bf16.msra.mxu0 %v962
    %1357 = vmatprep.subr.bf16.mxu0 %v967
    %1358 = vmatpush1.bf16.msra.mxu0 %v966
    %1359 = vmatprep.subr.bf16.mxu0 %v971
    %1360 = vmatpush1.bf16.msra.mxu0 %v970
    %1361 = vmatprep.subr.bf16.mxu0 %v975
    %1362 = vmatpush1.bf16.msra.mxu0 %v974
    %1363 = vmatprep.subr.bf16.mxu0 %v979
    %1364 = vmatpush1.bf16.msra.mxu0 %v978
    %1365 = vmatprep.subr.bf16.mxu0 %v983
    %1366 = vmatpush1.bf16.msra.mxu0 %v982
    %1367 = vmatprep.subr.bf16.mxu0 %v987
    %1368 = vmatpush1.bf16.msra.mxu0 %v986
    %1369 = vmatprep.subr.bf16.mxu0 %v991
    %1370 = vmatpush1.bf16.msra.mxu0 %v990
    %1371 = vmatprep.mubr.bf16.mxu0 %v317
    %1372 = vmatmul.mubr.bf16.gmra.mrb[0].mxu0 %v316
    %v1373 = vpop.f32.mrb[0].mxu0
    %v1374 = vadd.f32 %v1301, %v1373
    %v1375 = vpop.f32.mrb[0].mxu0
    %v1376 = vadd.f32 %v1303, %v1375
    %v1377 = vpop.f32.mrb[0].mxu0
    %v1378 = vadd.f32 %v1305, %v1377
    %v1379 = vpop.f32.mrb[0].mxu0
    %v1380 = vadd.f32 %v1307, %v1379
    %1381 = vmatprep.mubr.bf16.mxu0 %v321
    %1382 = vmatmul.mubr.bf16.gmra.mrb[0].mxu0 %v320
    %v1383 = vpop.f32.mrb[0].mxu0
    %v1384 = vadd.f32 %v1311, %v1383
    %v1385 = vpop.f32.mrb[0].mxu0
    %v1386 = vadd.f32 %v1313, %v1385
    %v1387 = vpop.f32.mrb[0].mxu0
    %v1388 = vadd.f32 %v1315, %v1387
    %v1389 = vpop.f32.mrb[0].mxu0
    %v1390 = vadd.f32 %v1317, %v1389
    %1391 = vmatprep.mubr.bf16.mxu0 %v325
    %1392 = vmatmul.mubr.bf16.gmra.mrb[0].mxu0 %v324
    %v1393 = vpop.f32.mrb[0].mxu0
    %v1394 = vadd.f32 %v1321, %v1393
    %v1395 = vpop.f32.mrb[0].mxu0
    %v1396 = vadd.f32 %v1323, %v1395
    %v1397 = vpop.f32.mrb[0].mxu0
    %v1398 = vadd.f32 %v1325, %v1397
    %v1399 = vpop.f32.mrb[0].mxu0
    %v1400 = vadd.f32 %v1327, %v1399
    %1401 = vmatprep.mubr.bf16.mxu0 %v329
    %1402 = vmatmul.mubr.bf16.gmra.mrb[0].mxu0 %v328
    %v1403 = vpop.f32.mrb[0].mxu0
    %v1404 = vadd.f32 %v1331, %v1403
    %v1405 = vpop.f32.mrb[0].mxu0
    %v1406 = vadd.f32 %v1333, %v1405
    %v1407 = vpop.f32.mrb[0].mxu0
    %v1408 = vadd.f32 %v1335, %v1407
    %v1409 = vpop.f32.mrb[0].mxu0
    %v1410 = vadd.f32 %v1337, %v1409
    %1411 = vdwg.mxu0
    %v1412 = vmax.f32 %v1228, 0.0
    %v1413 = vmax.f32 %v1230, 0.0
    %v1414 = vmax.f32 %v1374, 0.0
    %v1415 = vmax.f32 %v1376, 0.0
    %v1416 = vmax.f32 %v1232, 0.0
    %v1417 = vmax.f32 %v1234, 0.0
    %v1418 = vmax.f32 %v1378, 0.0
    %v1419 = vmax.f32 %v1380, 0.0
    %v1420 = vmax.f32 %v1238, 0.0
    %v1421 = vmax.f32 %v1240, 0.0
    %v1422 = vmax.f32 %v1384, 0.0
    %v1423 = vmax.f32 %v1386, 0.0
    %v1424 = vmax.f32 %v1242, 0.0
    %v1425 = vmax.f32 %v1244, 0.0
    %v1426 = vmax.f32 %v1388, 0.0
    %v1427 = vmax.f32 %v1390, 0.0
    %v1428 = vmax.f32 %v1248, 0.0
    %v1429 = vmax.f32 %v1250, 0.0
    %v1430 = vmax.f32 %v1394, 0.0
    %v1431 = vmax.f32 %v1396, 0.0
    %v1432 = vmax.f32 %v1252, 0.0
    %v1433 = vmax.f32 %v1254, 0.0
    %v1434 = vmax.f32 %v1398, 0.0
    %v1435 = vmax.f32 %v1400, 0.0
    %v1436 = vmax.f32 %v1258, 0.0
    %v1437 = vmax.f32 %v1260, 0.0
    %v1438 = vmax.f32 %v1404, 0.0
    %v1439 = vmax.f32 %v1406, 0.0
    %v1440 = vmax.f32 %v1262, 0.0
    %v1441 = vmax.f32 %v1264, 0.0
    %v1442 = vmax.f32 %v1408, 0.0
    %v1443 = vmax.f32 %v1410, 0.0
    %v1444 = vpack.c.bf16 %v1416, %v1412
    %v1445 = vpack.c.bf16 %v1417, %v1413
    %v1446 = vpack.c.bf16 %v1418, %v1414
    %v1447 = vpack.c.bf16 %v1419, %v1415
    %v1448 = vpack.c.bf16 %v1424, %v1420
    %v1449 = vpack.c.bf16 %v1425, %v1421
    %v1450 = vpack.c.bf16 %v1426, %v1422
    %v1451 = vpack.c.bf16 %v1427, %v1423
    %v1452 = vpack.c.bf16 %v1432, %v1428
    %v1453 = vpack.c.bf16 %v1433, %v1429
    %v1454 = vpack.c.bf16 %v1434, %v1430
    %v1455 = vpack.c.bf16 %v1435, %v1431
    %v1456 = vpack.c.bf16 %v1440, %v1436
    %v1457 = vpack.c.bf16 %v1441, %v1437
    %v1458 = vpack.c.bf16 %v1442, %v1438
    %v1459 = vpack.c.bf16 %v1443, %v1439
    %v1460 = vld [vmem:[%s5] sm:$0xf]
    %v1461 = vld [vmem:[%s5 + $0x4] sm:$0xf]
    %v1462 = vld [vmem:[%s5 + $0x8] sm:$0xf]
    %v1463 = vld [vmem:[%s5 + $0xc] sm:$0xf]
    %v1464 = vld [vmem:[%s5 + $0x10] sm:$0xf]
    %v1465 = vld [vmem:[%s5 + $0x14] sm:$0xf]
    %v1466 = vld [vmem:[%s5 + $0x18] sm:$0xf]
    %v1467 = vld [vmem:[%s5 + $0x1c] sm:$0xf]
    %v1468 = vld [vmem:[%s5 + $0x20] sm:$0xf]
    %v1469 = vld [vmem:[%s5 + $0x24] sm:$0xf]
    %v1470 = vld [vmem:[%s5 + $0x28] sm:$0xf]
    %v1471 = vld [vmem:[%s5 + $0x2c] sm:$0xf]
    %v1472 = vld [vmem:[%s5 + $0x30] sm:$0xf]
    %v1473 = vld [vmem:[%s5 + $0x34] sm:$0xf]
    %v1474 = vld [vmem:[%s5 + $0x38] sm:$0xf]
    %v1475 = vld [vmem:[%s5 + $0x3c] sm:$0xf]
    %v1476 = vld [vmem:[%s5 + $0x40] sm:$0xf]
    %v1477 = vld [vmem:[%s5 + $0x44] sm:$0xf]
    %v1478 = vld [vmem:[%s5 + $0x48] sm:$0xf]
    %v1479 = vld [vmem:[%s5 + $0x4c] sm:$0xf]
    %v1480 = vld [vmem:[%s5 + $0x50] sm:$0xf]
    %v1481 = vld [vmem:[%s5 + $0x54] sm:$0xf]
    %v1482 = vld [vmem:[%s5 + $0x58] sm:$0xf]
    %v1483 = vld [vmem:[%s5 + $0x5c] sm:$0xf]
    %v1484 = vld [vmem:[%s5 + $0x60] sm:$0xf]
    %v1485 = vld [vmem:[%s5 + $0x64] sm:$0xf]
    %v1486 = vld [vmem:[%s5 + $0x68] sm:$0xf]
    %v1487 = vld [vmem:[%s5 + $0x6c] sm:$0xf]
    %v1488 = vld [vmem:[%s5 + $0x70] sm:$0xf]
    %v1489 = vld [vmem:[%s5 + $0x74] sm:$0xf]
    %v1490 = vld [vmem:[%s5 + $0x78] sm:$0xf]
    %v1491 = vld [vmem:[%s5 + $0x7c] sm:$0xf]
    %v1492 = vld [vmem:[%s5 + $0x80] sm:$0xf]
    %v1493 = vld [vmem:[%s5 + $0x84] sm:$0xf]
    %v1494 = vld [vmem:[%s5 + $0x88] sm:$0xf]
    %v1495 = vld [vmem:[%s5 + $0x8c] sm:$0xf]
    %v1496 = vld [vmem:[%s5 + $0x90] sm:$0xf]
    %v1497 = vld [vmem:[%s5 + $0x94] sm:$0xf]
    %v1498 = vld [vmem:[%s5 + $0x98] sm:$0xf]
    %v1499 = vld [vmem:[%s5 + $0x9c] sm:$0xf]
    %v1500 = vld [vmem:[%s5 + $0xa0] sm:$0xf]
    %v1501 = vld [vmem:[%s5 + $0xa4] sm:$0xf]
    %v1502 = vld [vmem:[%s5 + $0xa8] sm:$0xf]
    %v1503 = vld [vmem:[%s5 + $0xac] sm:$0xf]
    %v1504 = vld [vmem:[%s5 + $0xb0] sm:$0xf]
    %v1505 = vld [vmem:[%s5 + $0xb4] sm:$0xf]
    %v1506 = vld [vmem:[%s5 + $0xb8] sm:$0xf]
    %v1507 = vld [vmem:[%s5 + $0xbc] sm:$0xf]
    %v1508 = vld [vmem:[%s5 + $0xc0] sm:$0xf]
    %v1509 = vld [vmem:[%s5 + $0xc4] sm:$0xf]
    %v1510 = vld [vmem:[%s5 + $0xc8] sm:$0xf]
    %v1511 = vld [vmem:[%s5 + $0xcc] sm:$0xf]
    %v1512 = vld [vmem:[%s5 + $0xd0] sm:$0xf]
    %v1513 = vld [vmem:[%s5 + $0xd4] sm:$0xf]
    %v1514 = vld [vmem:[%s5 + $0xd8] sm:$0xf]
    %v1515 = vld [vmem:[%s5 + $0xdc] sm:$0xf]
    %v1516 = vld [vmem:[%s5 + $0xe0] sm:$0xf]
    %v1517 = vld [vmem:[%s5 + $0xe4] sm:$0xf]
    %v1518 = vld [vmem:[%s5 + $0xe8] sm:$0xf]
    %v1519 = vld [vmem:[%s5 + $0xec] sm:$0xf]
    %v1520 = vld [vmem:[%s5 + $0xf0] sm:$0xf]
    %v1521 = vld [vmem:[%s5 + $0xf4] sm:$0xf]
    %v1522 = vld [vmem:[%s5 + $0xf8] sm:$0xf]
    %v1523 = vld [vmem:[%s5 + $0xfc] sm:$0xf]
    %v1524 = vld [vmem:[%s6] sm:$0x1]
    %v1526 = vlaneseq
    %v1527 = vshrl.u32 %v1526, 7
    %v1528 = vsub.s32 0, %v1527
    %v1529 = vrot.slane %v1524, %v1528
    %v1595 = vunpack.c.l.b16 %v1460
    %v1596 = vunpack.c.l.b16 %v1461
    %v1597 = vunpack.c.l.b16 %v1462
    %v1598 = vunpack.c.l.b16 %v1463
    %v1599 = vunpack.c.l.b16 %v1464
    %v1600 = vunpack.c.l.b16 %v1465
    %v1601 = vunpack.c.l.b16 %v1466
    %v1602 = vunpack.c.l.b16 %v1467
    %v1603 = vunpack.c.l.b16 %v1468
    %v1604 = vunpack.c.l.b16 %v1469
    %v1605 = vunpack.c.l.b16 %v1470
    %v1606 = vunpack.c.l.b16 %v1471
    %v1607 = vunpack.c.l.b16 %v1472
    %v1608 = vunpack.c.l.b16 %v1473
    %v1609 = vunpack.c.l.b16 %v1474
    %v1610 = vunpack.c.l.b16 %v1475
    %v1611 = vunpack.c.l.b16 %v1476
    %v1612 = vunpack.c.l.b16 %v1477
    %v1613 = vunpack.c.l.b16 %v1478
    %v1614 = vunpack.c.l.b16 %v1479
    %v1615 = vunpack.c.l.b16 %v1480
    %v1616 = vunpack.c.l.b16 %v1481
    %v1617 = vunpack.c.l.b16 %v1482
    %v1618 = vunpack.c.l.b16 %v1483
    %v1619 = vunpack.c.l.b16 %v1484
    %v1620 = vunpack.c.l.b16 %v1485
    %v1621 = vunpack.c.l.b16 %v1486
    %v1622 = vunpack.c.l.b16 %v1487
    %v1623 = vunpack.c.l.b16 %v1488
    %v1624 = vunpack.c.l.b16 %v1489
    %v1625 = vunpack.c.l.b16 %v1490
    %v1626 = vunpack.c.l.b16 %v1491
    %v1627 = vunpack.c.l.b16 %v1492
    %v1628 = vunpack.c.l.b16 %v1493
    %v1629 = vunpack.c.l.b16 %v1494
    %v1630 = vunpack.c.l.b16 %v1495
    %v1631 = vunpack.c.l.b16 %v1496
    %v1632 = vunpack.c.l.b16 %v1497
    %v1633 = vunpack.c.l.b16 %v1498
    %v1634 = vunpack.c.l.b16 %v1499
    %v1635 = vunpack.c.l.b16 %v1500
    %v1636 = vunpack.c.l.b16 %v1501
    %v1637 = vunpack.c.l.b16 %v1502
    %v1638 = vunpack.c.l.b16 %v1503
    %v1639 = vunpack.c.l.b16 %v1504
    %v1640 = vunpack.c.l.b16 %v1505
    %v1641 = vunpack.c.l.b16 %v1506
    %v1642 = vunpack.c.l.b16 %v1507
    %v1643 = vunpack.c.l.b16 %v1508
    %v1644 = vunpack.c.l.b16 %v1509
    %v1645 = vunpack.c.l.b16 %v1510
    %v1646 = vunpack.c.l.b16 %v1511
    %v1647 = vunpack.c.l.b16 %v1512
    %v1648 = vunpack.c.l.b16 %v1513
    %v1649 = vunpack.c.l.b16 %v1514
    %v1650 = vunpack.c.l.b16 %v1515
    %v1651 = vunpack.c.l.b16 %v1516
    %v1652 = vunpack.c.l.b16 %v1517
    %v1653 = vunpack.c.l.b16 %v1518
    %v1654 = vunpack.c.l.b16 %v1519
    %v1655 = vunpack.c.l.b16 %v1520
    %v1656 = vunpack.c.l.b16 %v1521
    %v1657 = vunpack.c.l.b16 %v1522
    %v1658 = vunpack.c.l.b16 %v1523
    %v1659 = vpack.c.b16 %v1596, %v1595
    %v1660 = vpack.c.b16 %v1598, %v1597
    %v1661 = vpack.c.b16 %v1600, %v1599
    %v1662 = vpack.c.b16 %v1602, %v1601
    %v1663 = vpack.c.b16 %v1604, %v1603
    %v1664 = vpack.c.b16 %v1606, %v1605
    %v1665 = vpack.c.b16 %v1608, %v1607
    %v1666 = vpack.c.b16 %v1610, %v1609
    %v1667 = vpack.c.b16 %v1612, %v1611
    %v1668 = vpack.c.b16 %v1614, %v1613
    %v1669 = vpack.c.b16 %v1616, %v1615
    %v1670 = vpack.c.b16 %v1618, %v1617
    %v1671 = vpack.c.b16 %v1620, %v1619
    %v1672 = vpack.c.b16 %v1622, %v1621
    %v1673 = vpack.c.b16 %v1624, %v1623
    %v1674 = vpack.c.b16 %v1626, %v1625
    %v1675 = vpack.c.b16 %v1628, %v1627
    %v1676 = vpack.c.b16 %v1630, %v1629
    %v1677 = vpack.c.b16 %v1632, %v1631
    %v1678 = vpack.c.b16 %v1634, %v1633
    %v1679 = vpack.c.b16 %v1636, %v1635
    %v1680 = vpack.c.b16 %v1638, %v1637
    %v1681 = vpack.c.b16 %v1640, %v1639
    %v1682 = vpack.c.b16 %v1642, %v1641
    %v1683 = vpack.c.b16 %v1644, %v1643
    %v1684 = vpack.c.b16 %v1646, %v1645
    %v1685 = vpack.c.b16 %v1648, %v1647
    %v1686 = vpack.c.b16 %v1650, %v1649
    %v1687 = vpack.c.b16 %v1652, %v1651
    %v1688 = vpack.c.b16 %v1654, %v1653
    %v1689 = vpack.c.b16 %v1656, %v1655
    %v1690 = vpack.c.b16 %v1658, %v1657
    %1723 = vmatprep.subr.bf16.mxu0 0
    %1724 = vmatpush1.bf16.msra.mxu0 %v1659
    %1725 = vmatprep.subr.bf16.mxu0 0
    %1726 = vmatpush1.bf16.msra.mxu0 %v1660
    %1727 = vmatprep.subr.bf16.mxu0 0
    %1728 = vmatpush1.bf16.msra.mxu0 %v1661
    %1729 = vmatprep.subr.bf16.mxu0 0
    %1730 = vmatpush1.bf16.msra.mxu0 %v1662
    %1731 = vmatprep.subr.bf16.mxu0 0
    %1732 = vmatpush1.bf16.msra.mxu0 %v1663
    %1733 = vmatprep.subr.bf16.mxu0 0
    %1734 = vmatpush1.bf16.msra.mxu0 %v1664
    %1735 = vmatprep.subr.bf16.mxu0 0
    %1736 = vmatpush1.bf16.msra.mxu0 %v1665
    %1737 = vmatprep.subr.bf16.mxu0 0
    %1738 = vmatpush1.bf16.msra.mxu0 %v1666
    %1739 = vmatprep.subr.bf16.mxu0 0
    %1740 = vmatpush1.bf16.msra.mxu0 %v1667
    %1741 = vmatprep.subr.bf16.mxu0 0
    %1742 = vmatpush1.bf16.msra.mxu0 %v1668
    %1743 = vmatprep.subr.bf16.mxu0 0
    %1744 = vmatpush1.bf16.msra.mxu0 %v1669
    %1745 = vmatprep.subr.bf16.mxu0 0
    %1746 = vmatpush1.bf16.msra.mxu0 %v1670
    %1747 = vmatprep.subr.bf16.mxu0 0
    %1748 = vmatpush1.bf16.msra.mxu0 %v1671
    %1749 = vmatprep.subr.bf16.mxu0 0
    %1750 = vmatpush1.bf16.msra.mxu0 %v1672
    %1751 = vmatprep.subr.bf16.mxu0 0
    %1752 = vmatpush1.bf16.msra.mxu0 %v1673
    %1753 = vmatprep.subr.bf16.mxu0 0
    %1754 = vmatpush1.bf16.msra.mxu0 %v1674
    %1755 = vmatprep.mubr.bf16.mxu0 %v1445
    %1756 = vmatmul.mubr.bf16.gmra.mrb[0].mxu0 %v1444
    %v1757 = vpop.f32.mrb[0].mxu0
    %v1758 = vadd.f32 %v1529, %v1757
    %v1759 = vpop.f32.mrb[0].mxu0
    %v1760 = vpop.f32.mrb[0].mxu0
    %v1761 = vadd.f32 %v1529, %v1760
    %v1762 = vpop.f32.mrb[0].mxu0
    %1763 = vmatprep.mubr.bf16.mxu0 %v1449
    %1764 = vmatmul.mubr.bf16.gmra.mrb[0].mxu0 %v1448
    %v1765 = vpop.f32.mrb[0].mxu0
    %v1766 = vadd.f32 %v1529, %v1765
    %v1767 = vpop.f32.mrb[0].mxu0
    %v1768 = vpop.f32.mrb[0].mxu0
    %v1769 = vadd.f32 %v1529, %v1768
    %v1770 = vpop.f32.mrb[0].mxu0
    %1771 = vmatprep.mubr.bf16.mxu0 %v1453
    %1772 = vmatmul.mubr.bf16.gmra.mrb[0].mxu0 %v1452
    %v1773 = vpop.f32.mrb[0].mxu0
    %v1774 = vadd.f32 %v1529, %v1773
    %v1775 = vpop.f32.mrb[0].mxu0
    %v1776 = vpop.f32.mrb[0].mxu0
    %v1777 = vadd.f32 %v1529, %v1776
    %v1778 = vpop.f32.mrb[0].mxu0
    %1779 = vmatprep.mubr.bf16.mxu0 %v1457
    %1780 = vmatmul.mubr.bf16.gmra.mrb[0].mxu0 %v1456
    %v1781 = vpop.f32.mrb[0].mxu0
    %v1782 = vadd.f32 %v1529, %v1781
    %v1783 = vpop.f32.mrb[0].mxu0
    %v1784 = vpop.f32.mrb[0].mxu0
    %v1785 = vadd.f32 %v1529, %v1784
    %v1786 = vpop.f32.mrb[0].mxu0
    %1787 = vdwg.mxu0
    %1788 = vmatprep.subr.bf16.mxu0 0
    %1789 = vmatpush1.bf16.msra.mxu0 %v1675
    %1790 = vmatprep.subr.bf16.mxu0 0
    %1791 = vmatpush1.bf16.msra.mxu0 %v1676
    %1792 = vmatprep.subr.bf16.mxu0 0
    %1793 = vmatpush1.bf16.msra.mxu0 %v1677
    %1794 = vmatprep.subr.bf16.mxu0 0
    %1795 = vmatpush1.bf16.msra.mxu0 %v1678
    %1796 = vmatprep.subr.bf16.mxu0 0
    %1797 = vmatpush1.bf16.msra.mxu0 %v1679
    %1798 = vmatprep.subr.bf16.mxu0 0
    %1799 = vmatpush1.bf16.msra.mxu0 %v1680
    %1800 = vmatprep.subr.bf16.mxu0 0
    %1801 = vmatpush1.bf16.msra.mxu0 %v1681
    %1802 = vmatprep.subr.bf16.mxu0 0
    %1803 = vmatpush1.bf16.msra.mxu0 %v1682
    %1804 = vmatprep.subr.bf16.mxu0 0
    %1805 = vmatpush1.bf16.msra.mxu0 %v1683
    %1806 = vmatprep.subr.bf16.mxu0 0
    %1807 = vmatpush1.bf16.msra.mxu0 %v1684
    %1808 = vmatprep.subr.bf16.mxu0 0
    %1809 = vmatpush1.bf16.msra.mxu0 %v1685
    %1810 = vmatprep.subr.bf16.mxu0 0
    %1811 = vmatpush1.bf16.msra.mxu0 %v1686
    %1812 = vmatprep.subr.bf16.mxu0 0
    %1813 = vmatpush1.bf16.msra.mxu0 %v1687
    %1814 = vmatprep.subr.bf16.mxu0 0
    %1815 = vmatpush1.bf16.msra.mxu0 %v1688
    %1816 = vmatprep.subr.bf16.mxu0 0
    %1817 = vmatpush1.bf16.msra.mxu0 %v1689
    %1818 = vmatprep.subr.bf16.mxu0 0
    %1819 = vmatpush1.bf16.msra.mxu0 %v1690
    %1820 = vmatprep.mubr.bf16.mxu0 %v1447
    %1821 = vmatmul.mubr.bf16.gmra.mrb[0].mxu0 %v1446
    %v1822 = vpop.f32.mrb[0].mxu0
    %v1823 = vadd.f32 %v1758, %v1822
    %v1824 = vpop.f32.mrb[0].mxu0
    %v1825 = vpop.f32.mrb[0].mxu0
    %v1826 = vadd.f32 %v1761, %v1825
    %v1827 = vpop.f32.mrb[0].mxu0
    %1828 = vmatprep.mubr.bf16.mxu0 %v1451
    %1829 = vmatmul.mubr.bf16.gmra.mrb[0].mxu0 %v1450
    %v1830 = vpop.f32.mrb[0].mxu0
    %v1831 = vadd.f32 %v1766, %v1830
    %v1832 = vpop.f32.mrb[0].mxu0
    %v1833 = vpop.f32.mrb[0].mxu0
    %v1834 = vadd.f32 %v1769, %v1833
    %v1835 = vpop.f32.mrb[0].mxu0
    %1836 = vmatprep.mubr.bf16.mxu0 %v1455
    %1837 = vmatmul.mubr.bf16.gmra.mrb[0].mxu0 %v1454
    %v1838 = vpop.f32.mrb[0].mxu0
    %v1839 = vadd.f32 %v1774, %v1838
    %v1840 = vpop.f32.mrb[0].mxu0
    %v1841 = vpop.f32.mrb[0].mxu0
    %v1842 = vadd.f32 %v1777, %v1841
    %v1843 = vpop.f32.mrb[0].mxu0
    %1844 = vmatprep.mubr.bf16.mxu0 %v1459
    %1845 = vmatmul.mubr.bf16.gmra.mrb[0].mxu0 %v1458
    %v1846 = vpop.f32.mrb[0].mxu0
    %v1847 = vadd.f32 %v1782, %v1846
    %v1848 = vpop.f32.mrb[0].mxu0
    %v1849 = vpop.f32.mrb[0].mxu0
    %v1850 = vadd.f32 %v1785, %v1849
    %v1851 = vpop.f32.mrb[0].mxu0
    %1852 = vdwg.mxu0
    %vm1853 = vcmask 64512
    %1854 = vst.msk [vmem:[%s7] sm:$0xff] %vm1853, %v1823
    %1855 = vst.msk [vmem:[%s7 + $0x8] sm:$0xff] %vm1853, %v1826
    %1856 = vst.msk [vmem:[%s7 + $0x10] sm:$0xff] %vm1853, %v1831
    %1857 = vst.msk [vmem:[%s7 + $0x18] sm:$0xff] %vm1853, %v1834
    %1858 = vst.msk [vmem:[%s7 + $0x20] sm:$0xff] %vm1853, %v1839
    %1859 = vst.msk [vmem:[%s7 + $0x28] sm:$0xff] %vm1853, %v1842
    %1860 = vst.msk [vmem:[%s7 + $0x30] sm:$0xff] %vm1853, %v1847
    %1861 = vst.msk [vmem:[%s7 + $0x38] sm:$0xff] %vm1853, %v1850
    // Predicated region
    $region34: #{dpl_mlp_forward.1} parent=1 // pred_check
      _
    $region35: #{dpl_mlp_forward.1} parent=1 // pred_check_branch
      %1863 = sbr.rel (0) target = $region37
    $region36: #{dpl_mlp_forward.1} parent=1 // pred_region
      _
    $region37: #{dpl_mlp_forward.1} parent=1 // pred_fallthru
      _
    // Predicated region
    $region38: #{dpl_mlp_forward.1} parent=1 // pred_check
      _
    $region39: #{dpl_mlp_forward.1} parent=1 // pred_check_branch
      %1865 = sbr.rel (0) target = $region41
    $region40: #{dpl_mlp_forward.1} parent=1 // pred_region
      _
    $region41: #{dpl_mlp_forward.1} parent=1 // pred_fallthru
      _
    %1866 = vsyncpa [#allocation3], 1

</llo_original>
